<compile_context>
chip_gen: v6e
topology: v6e:2x2x1
jax: 0.10.0
libtpu: 0.0.40
codegen_flags: <defaults>
</compile_context>

<pallas_src>
import functools

import jax
import jax.numpy as jnp
import numpy as np
from jax import lax
from jax.experimental import pallas as pl
from jax.experimental.pallas import tpu as pltpu


# --------------------------------------------------------------------------- #
# Hardware-aware configuration helpers
# --------------------------------------------------------------------------- #
def _device_kind() -> str:
    try:
        return jax.devices()[0].device_kind.lower()
    except Exception:
        return ""


def _vmem_capacity_bytes() -> int:
    """Physical VMEM per TensorCore (generation-aware, conservative fallback)."""
    try:
        cap = int(pltpu.get_tpu_info().vmem_capacity_bytes)
        if cap > 0:
            return cap
    except Exception:
        pass
    kind = _device_kind()
    if ("v5" in kind) or ("v6" in kind):
        return 128 << 20
    return 64 << 20  # v7x per-TC; safe lower bound for unknown chips


def _exp_in_bf16() -> bool:
    """bf16 EUP/VPU/MXU paths exist on v6e/v7x; keep f32 on v5e and older."""
    kind = _device_kind()
    return any(tag in kind for tag in ("v6", "v7", "tpu7"))


def _choose_tile_p(n: int) -> int:
    """Query (p) tile: lane-dense (multiple of 128) divisor of N, <= 512."""
    if n <= 512:
        return n
    for t in (512, 384, 256, 128):
        if n % t == 0:
            return t
    # TODO(synk): N > 512 with no 128-multiple divisor keeps a single query
    # tile; a BoundedSlice-based ragged tiling would remove this fallback.
    return n


def _choose_chunk_q(n: int) -> int:
    """Key (q) chunk per inner-loop step; bounds the (QC, TP) temporaries."""
    if n <= 1024:
        return n
    for t in (1024, 768, 512, 384, 256, 128):
        if n % t == 0:
            return t
    return n


def _choose_channel_tile(c: int) -> int:
    """Channels per grid step; amortizes per-step overhead for small images."""
    for t in (8, 7, 6, 5, 4, 3, 2):
        if c % t == 0:
            return t
    return 1


# --------------------------------------------------------------------------- #
# Kernel
# --------------------------------------------------------------------------- #
def _psm_kernel(mstats_ref, gamma_ref, f_ref, mcol_ref, o_ref, *, qc, exp_dtype):
    # mstats_ref: (B, 2)  f32 SMEM   -- per-batch [max(m), min(m)] (hoisted)
    # gamma_ref : (1,)    f32 SMEM
    # f_ref     : (1, CT, 1, N)  f32 -- CT feature channels (full key axis)
    # mcol_ref  : (1, N, 1)      f32 -- probability-map channel 1, column layout
    # o_ref     : (1, CT, 1, TP) f32 -- output tile along the query (p) axis
    ct = f_ref.shape[1]
    n = f_ref.shape[3]
    tp = o_ref.shape[3]
    num_qc = n // qc

    b = pl.program_id(0)
    p0 = pl.multiple_of(pl.program_id(2) * tp, tp)

    gamma = gamma_ref[0]
    m_max = mstats_ref[b, 0]
    m_min = mstats_ref[b, 1]

    # Hoisted loop-invariant constant: selects the feature row vs the ones row
    # of the in-register LHS = [f ; 1] (no ones row in HBM).
    is_f_row = lax.broadcasted_iota(jnp.int32, (2, qc), 0) == 0

    # Channels are statically unrolled; every iteration ends in an o_ref store,
    # so the large (QC, TP) temporaries do not stay live across channels.
    for ci in range(ct):
        fc_t = f_ref[0, ci, 0:1, pl.ds(p0, tp)]                    # (1, TP) queries
        # Exact row max of the rank-1 energy f[p]*m[q]: O(TP) work, no N^2 max.
        e_max = jnp.where(fc_t >= 0, fc_t * m_max, fc_t * m_min)   # (1, TP)

        def q_step(qi, acc, ci=ci, fc_t=fc_t, e_max=e_max):
            q0 = pl.multiple_of(qi * qc, qc)
            m_chunk = mcol_ref[0, pl.ds(q0, qc), :]                # (QC, 1)
            # Transposed energy chunk: rows = key q, cols = query p (lane-dense).
            y = m_chunk * fc_t - e_max                             # (QC, TP) f32
            p_exp = jnp.exp(y.astype(exp_dtype))                   # (QC, TP)
            f_chunk = f_ref[0, ci, 0:1, pl.ds(q0, qc)]             # (1, QC) values
            lhs = jnp.where(is_f_row,
                            jnp.broadcast_to(f_chunk, (2, qc)),
                            1.0).astype(exp_dtype)                 # (2, QC)
            # One MXU contraction: row 0 = sum_q f*exp, row 1 = Z (denominator).
            return acc + jnp.dot(lhs, p_exp, preferred_element_type=jnp.float32)

        acc0 = jnp.zeros((2, tp), jnp.float32)
        if num_qc == 1:
            acc = q_step(0, acc0)
        else:
            acc = lax.fori_loop(0, num_qc, q_step, acc0)

        z = acc[1:2, :]
        inv_z = pl.reciprocal(z, approx=True)
        inv_z = inv_z * (2.0 - z * inv_z)          # one Newton step: near-exact 1/Z
        o_ref[0, ci, 0:1, :] = gamma * acc[0:1, :] * inv_z + fc_t


# --------------------------------------------------------------------------- #
# Wrapper
# --------------------------------------------------------------------------- #
def psm_forward(feature, seg_map, gamma):
    """feature: (B, C, H, W), seg_map: (B, M>=2, H, W), gamma: scalar."""
    B, C, H, W = feature.shape
    n = H * W
    tp = _choose_tile_p(n)
    qc = _choose_chunk_q(n)
    ct = _choose_channel_tile(C)
    npt = n // tp

    f32 = jnp.float32
    f_rows = feature.reshape(B, C, 1, n).astype(f32)            # (B, C, 1, N)
    m_flat = seg_map[:, 1, :, :].reshape(B, n).astype(f32)      # (B, N)
    m_col = m_flat.reshape(B, n, 1)                             # (B, N, 1)
    # Hoisted per-batch statistics for the analytic softmax row max.
    m_stats = jnp.stack([jnp.max(m_flat, axis=1),
                         jnp.min(m_flat, axis=1)], axis=1)      # (B, 2)
    gamma_arr = jnp.asarray(gamma, f32).reshape(1)

    use_bf16 = _exp_in_bf16()
    exp_dtype = jnp.bfloat16 if use_bf16 else jnp.float32
    exp_bytes = 2 if use_bf16 else 4

    # VMEM budget sized to the *chunked* working set: double-buffered blocks
    # plus the per-q-chunk temporaries, clamped below physical VMEM per chip gen.
    est = (2 * ct * 8 * n * 4          # feature block (sublane-padded rows), 2 bufs
           + 2 * n * 128 * 4           # map column block (lane-padded), 2 bufs
           + 2 * ct * 8 * tp * 4       # output block, 2 bufs
           + 3 * qc * tp * 4           # f32 energy temporaries per q-chunk
           + 2 * qc * tp * exp_bytes   # exp tile(s) per q-chunk
           + (4 << 20))                # Mosaic internal-scratch headroom
    vmem_cap = _vmem_capacity_bytes()
    vmem_limit = int(min(max(est, 32 << 20), (3 * vmem_cap) // 4))

    kernel = functools.partial(_psm_kernel, qc=qc, exp_dtype=exp_dtype)

    out = pl.pallas_call(
        kernel,
        out_shape=jax.ShapeDtypeStruct((B, C, 1, n), f32),
        grid=(B, C // ct, npt),
        in_specs=[
            pl.BlockSpec(memory_space=pltpu.MemorySpace.SMEM),            # m_stats
            pl.BlockSpec(memory_space=pltpu.MemorySpace.SMEM),            # gamma
            pl.BlockSpec((1, ct, 1, n), lambda b, c, p: (b, c, 0, 0)),    # features
            pl.BlockSpec((1, n, 1), lambda b, c, p: (b, 0, 0)),           # map column
        ],
        out_specs=pl.BlockSpec((1, ct, 1, tp), lambda b, c, p: (b, c, 0, p)),
        compiler_params=pltpu.CompilerParams(
            dimension_semantics=("parallel", "parallel", "parallel"),
            vmem_limit_bytes=vmem_limit),
    )(m_stats, gamma_arr, f_rows, m_col)

    return out.reshape(B, C, H, W)


# --------------------------------------------------------------------------- #
# Pure-JAX reference (mirrors the PyTorch forward)
# --------------------------------------------------------------------------- #
def psm_reference(feature, seg_map, gamma):
    B, C, H, W = feature.shape
    n = H * W
    f = feature.reshape(B, C, n).astype(jnp.float32)
    m = seg_map[:, 1, :, :].reshape(B, n).astype(jnp.float32)
    energy = f[:, :, :, None] * m[:, None, None, :]          # (B, C, N, N)
    attn = jax.nn.softmax(energy, axis=-1)
    enhance = jnp.einsum('bcq,bcpq->bcp', f, attn)           # (B, C, N)
    return (gamma * enhance + f).reshape(B, C, H, W)


if __name__ == "__main__":
    key = jax.random.PRNGKey(0)
    k1, k2 = jax.random.split(key)

    B, C, H, W = 2, 4, 16, 16
    feature = jax.random.normal(k1, (B, C, H, W), dtype=jnp.float32)
    seg_map = jax.random.normal(k2, (B, 2, H, W), dtype=jnp.float32)

    # nn.Parameter(torch.zeros(1)) initializes gamma to 0, which would make the
    # attention branch a no-op; use a non-zero value to exercise it.
    gamma = 0.5

    out = jax.block_until_ready(psm_forward(feature, seg_map, gamma))
    ref = jax.block_until_ready(psm_reference(feature, seg_map, gamma))

    # f32 path (v5e / unknown): exact row-max + Newton-refined reciprocal.
    # bf16 path (v6e / v7x): the exp argument / operands carry bf16 rounding
    # (the perf-review trade-off for ~2x EUP throughput), so compare at a
    # correspondingly relaxed tolerance.
    tol = 1e-2 if _exp_in_bf16() else 2e-3
    np.testing.assert_allclose(np.asarray(out), np.asarray(ref), rtol=tol, atol=tol)
    print("KERNEL_OK")
</pallas_src>

<mosaic_0001>
module attributes {stable_mosaic.version = 11 : i64} {
  func.func @_psm_kernel(%arg0: i32, %arg1: i32, %arg2: i32, %arg3: memref<2x2xf32, #tpu.memory_space<smem>>, %arg4: memref<1xf32, #tpu.memory_space<smem>>, %arg5: memref<1x4x1x256xf32, #tpu.memory_space<vmem>>, %arg6: memref<1x256x1xf32, #tpu.memory_space<vmem>>, %arg7: memref<1x4x1x256xf32, #tpu.memory_space<vmem>>) attributes {dimension_semantics = [#tpu.dimension_semantics<parallel>, #tpu.dimension_semantics<parallel>, #tpu.dimension_semantics<parallel>], iteration_bounds = array<i64: 2, 1, 1>, scalar_prefetch = 0 : i64, scratch_operands = 0 : i64, tpu.core_type = #tpu.core_type<tc>, window_params = [{transform_indices = @transform_0, window_bounds = array<i64: 2, 2>}, {transform_indices = @transform_1, window_bounds = array<i64: 1>}, {transform_indices = @transform_2, window_bounds = array<i64: 1, 4, 1, 256>}, {transform_indices = @transform_3, window_bounds = array<i64: 1, 256, 1>}, {transform_indices = @transform_4, window_bounds = array<i64: 1, 4, 1, 256>}]} {
    %c256_i32 = arith.constant 256 : i32
    %0 = arith.muli %arg2, %c256_i32 : i32
    %1 = tpu.assume_multiple %0, 256 : i32
    %c0 = arith.constant 0 : index
    %2 = memref.load %arg4[%c0] : memref<1xf32, #tpu.memory_space<smem>>
    %3 = arith.index_cast %arg0 : i32 to index
    %c0_0 = arith.constant 0 : index
    %4 = memref.load %arg3[%3, %c0_0] : memref<2x2xf32, #tpu.memory_space<smem>>
    %5 = arith.index_cast %arg0 : i32 to index
    %c1 = arith.constant 1 : index
    %6 = memref.load %arg3[%5, %c1] : memref<2x2xf32, #tpu.memory_space<smem>>
    %7 = tpu.iota {dimensions = array<i32: 0>} : vector<2x256xi32>
    %c0_i32 = arith.constant 0 : i32
    %8 = vector.broadcast %c0_i32 : i32 to vector<2x256xi32>
    %9 = arith.cmpi eq, %7, %8 : vector<2x256xi32>
    %c0_1 = arith.constant 0 : index
    %c0_2 = arith.constant 0 : index
    %c0_3 = arith.constant 0 : index
    %10 = arith.index_cast %1 : i32 to index
    %11 = vector.load %arg5[%c0_1, %c0_2, %c0_3, %10] : memref<1x4x1x256xf32, #tpu.memory_space<vmem>>, vector<1x1x1x256xf32>
    %12 = vector.shape_cast %11 : vector<1x1x1x256xf32> to vector<1x256xf32>
    %cst = arith.constant 0.000000e+00 : f32
    %13 = vector.broadcast %cst : f32 to vector<1x256xf32>
    %14 = arith.cmpf oge, %12, %13 : vector<1x256xf32>
    %15 = vector.broadcast %4 : f32 to vector<1x256xf32>
    %16 = arith.mulf %12, %15 : vector<1x256xf32>
    %17 = vector.broadcast %6 : f32 to vector<1x256xf32>
    %18 = arith.mulf %12, %17 : vector<1x256xf32>
    %19 = arith.select %14, %16, %18 : vector<1x256xi1>, vector<1x256xf32>
    %cst_4 = arith.constant 0.000000e+00 : f32
    %20 = vector.broadcast %cst_4 : f32 to vector<2x256xf32>
    %c0_i32_5 = arith.constant 0 : i32
    %21 = tpu.assume_multiple %c0_i32_5, 256 : i32
    %c0_6 = arith.constant 0 : index
    %22 = arith.index_cast %21 : i32 to index
    %c0_7 = arith.constant 0 : index
    %23 = vector.load %arg6[%c0_6, %22, %c0_7] : memref<1x256x1xf32, #tpu.memory_space<vmem>>, vector<1x256x1xf32>
    %24 = vector.shape_cast %23 : vector<1x256x1xf32> to vector<256x1xf32>
    %25 = vector.broadcast %24 : vector<256x1xf32> to vector<256x256xf32>
    %26 = vector.broadcast %12 : vector<1x256xf32> to vector<256x256xf32>
    %27 = arith.mulf %25, %26 : vector<256x256xf32>
    %28 = vector.broadcast %19 : vector<1x256xf32> to vector<256x256xf32>
    %29 = arith.subf %27, %28 : vector<256x256xf32>
    %30 = math.exp %29 : vector<256x256xf32>
    %c0_8 = arith.constant 0 : index
    %c0_9 = arith.constant 0 : index
    %c0_10 = arith.constant 0 : index
    %31 = arith.index_cast %21 : i32 to index
    %32 = vector.load %arg5[%c0_8, %c0_9, %c0_10, %31] : memref<1x4x1x256xf32, #tpu.memory_space<vmem>>, vector<1x1x1x256xf32>
    %33 = vector.shape_cast %32 : vector<1x1x1x256xf32> to vector<1x256xf32>
    %34 = vector.shape_cast %33 : vector<1x256xf32> to vector<1x256xf32>
    %35 = vector.broadcast %34 : vector<1x256xf32> to vector<2x256xf32>
    %cst_11 = arith.constant 1.000000e+00 : f32
    %36 = vector.broadcast %cst_11 : f32 to vector<2x256xf32>
    %37 = arith.select %9, %35, %36 : vector<2x256xi1>, vector<2x256xf32>
    %cst_12 = arith.constant dense<0.000000e+00> : vector<2x256xf32>
    %38 = tpu.matmul %37, %30, %cst_12 {dimension_numbers = #tpu.dot_dimension_numbers<[1], [0], [0], [1], [0, 0, 1, 1], [], []>} : vector<2x256xf32>, vector<256x256xf32>, vector<2x256xf32> -> vector<2x256xf32>
    %39 = arith.addf %20, %38 : vector<2x256xf32>
    %40 = vector.extract_strided_slice %39 {offsets = [1, 0], sizes = [1, 256], strides = [1, 1]} : vector<2x256xf32> to vector<1x256xf32>
    %41 = tpu.reciprocal %40 {approx = true} : vector<1x256xf32> -> vector<1x256xf32>
    %42 = arith.mulf %40, %41 : vector<1x256xf32>
    %cst_13 = arith.constant 2.000000e+00 : f32
    %43 = vector.broadcast %cst_13 : f32 to vector<1x256xf32>
    %44 = arith.subf %43, %42 : vector<1x256xf32>
    %45 = arith.mulf %41, %44 : vector<1x256xf32>
    %46 = vector.extract_strided_slice %39 {offsets = [0, 0], sizes = [1, 256], strides = [1, 1]} : vector<2x256xf32> to vector<1x256xf32>
    %47 = vector.broadcast %2 : f32 to vector<1x256xf32>
    %48 = arith.mulf %47, %46 : vector<1x256xf32>
    %49 = arith.mulf %48, %45 : vector<1x256xf32>
    %50 = arith.addf %49, %12 : vector<1x256xf32>
    %c0_14 = arith.constant 0 : index
    %c0_15 = arith.constant 0 : index
    %c0_16 = arith.constant 0 : index
    %c0_17 = arith.constant 0 : index
    %51 = vector.load %arg7[%c0_14, %c0_15, %c0_16, %c0_17] : memref<1x4x1x256xf32, #tpu.memory_space<vmem>>, vector<1x1x1x256xf32>
    %52 = vector.shape_cast %51 : vector<1x1x1x256xf32> to vector<1x256xf32>
    %53 = vector.shape_cast %50 : vector<1x256xf32> to vector<1x1x1x256xf32>
    tpu.vector_store %arg7[%c0_14, %c0_15, %c0_16, %c0_17], %53 {strides = array<i32>} : memref<1x4x1x256xf32, #tpu.memory_space<vmem>>, vector<1x1x1x256xf32>,
    %c0_18 = arith.constant 0 : index
    %c1_19 = arith.constant 1 : index
    %c0_20 = arith.constant 0 : index
    %54 = arith.index_cast %1 : i32 to index
    %55 = vector.load %arg5[%c0_18, %c1_19, %c0_20, %54] : memref<1x4x1x256xf32, #tpu.memory_space<vmem>>, vector<1x1x1x256xf32>
    %56 = vector.shape_cast %55 : vector<1x1x1x256xf32> to vector<1x256xf32>
    %cst_21 = arith.constant 0.000000e+00 : f32
    %57 = vector.broadcast %cst_21 : f32 to vector<1x256xf32>
    %58 = arith.cmpf oge, %56, %57 : vector<1x256xf32>
    %59 = vector.broadcast %4 : f32 to vector<1x256xf32>
    %60 = arith.mulf %56, %59 : vector<1x256xf32>
    %61 = vector.broadcast %6 : f32 to vector<1x256xf32>
    %62 = arith.mulf %56, %61 : vector<1x256xf32>
    %63 = arith.select %58, %60, %62 : vector<1x256xi1>, vector<1x256xf32>
    %cst_22 = arith.constant 0.000000e+00 : f32
    %64 = vector.broadcast %cst_22 : f32 to vector<2x256xf32>
    %c0_i32_23 = arith.constant 0 : i32
    %65 = tpu.assume_multiple %c0_i32_23, 256 : i32
    %c0_24 = arith.constant 0 : index
    %66 = arith.index_cast %65 : i32 to index
    %c0_25 = arith.constant 0 : index
    %67 = vector.load %arg6[%c0_24, %66, %c0_25] : memref<1x256x1xf32, #tpu.memory_space<vmem>>, vector<1x256x1xf32>
    %68 = vector.shape_cast %67 : vector<1x256x1xf32> to vector<256x1xf32>
    %69 = vector.broadcast %68 : vector<256x1xf32> to vector<256x256xf32>
    %70 = vector.broadcast %56 : vector<1x256xf32> to vector<256x256xf32>
    %71 = arith.mulf %69, %70 : vector<256x256xf32>
    %72 = vector.broadcast %63 : vector<1x256xf32> to vector<256x256xf32>
    %73 = arith.subf %71, %72 : vector<256x256xf32>
    %74 = math.exp %73 : vector<256x256xf32>
    %c0_26 = arith.constant 0 : index
    %c1_27 = arith.constant 1 : index
    %c0_28 = arith.constant 0 : index
    %75 = arith.index_cast %65 : i32 to index
    %76 = vector.load %arg5[%c0_26, %c1_27, %c0_28, %75] : memref<1x4x1x256xf32, #tpu.memory_space<vmem>>, vector<1x1x1x256xf32>
    %77 = vector.shape_cast %76 : vector<1x1x1x256xf32> to vector<1x256xf32>
    %78 = vector.shape_cast %77 : vector<1x256xf32> to vector<1x256xf32>
    %79 = vector.broadcast %78 : vector<1x256xf32> to vector<2x256xf32>
    %cst_29 = arith.constant 1.000000e+00 : f32
    %80 = vector.broadcast %cst_29 : f32 to vector<2x256xf32>
    %81 = arith.select %9, %79, %80 : vector<2x256xi1>, vector<2x256xf32>
    %cst_30 = arith.constant dense<0.000000e+00> : vector<2x256xf32>
    %82 = tpu.matmul %81, %74, %cst_30 {dimension_numbers = #tpu.dot_dimension_numbers<[1], [0], [0], [1], [0, 0, 1, 1], [], []>} : vector<2x256xf32>, vector<256x256xf32>, vector<2x256xf32> -> vector<2x256xf32>
    %83 = arith.addf %64, %82 : vector<2x256xf32>
    %84 = vector.extract_strided_slice %83 {offsets = [1, 0], sizes = [1, 256], strides = [1, 1]} : vector<2x256xf32> to vector<1x256xf32>
    %85 = tpu.reciprocal %84 {approx = true} : vector<1x256xf32> -> vector<1x256xf32>
    %86 = arith.mulf %84, %85 : vector<1x256xf32>
    %cst_31 = arith.constant 2.000000e+00 : f32
    %87 = vector.broadcast %cst_31 : f32 to vector<1x256xf32>
    %88 = arith.subf %87, %86 : vector<1x256xf32>
    %89 = arith.mulf %85, %88 : vector<1x256xf32>
    %90 = vector.extract_strided_slice %83 {offsets = [0, 0], sizes = [1, 256], strides = [1, 1]} : vector<2x256xf32> to vector<1x256xf32>
    %91 = vector.broadcast %2 : f32 to vector<1x256xf32>
    %92 = arith.mulf %91, %90 : vector<1x256xf32>
    %93 = arith.mulf %92, %89 : vector<1x256xf32>
    %94 = arith.addf %93, %56 : vector<1x256xf32>
    %c0_32 = arith.constant 0 : index
    %c1_33 = arith.constant 1 : index
    %c0_34 = arith.constant 0 : index
    %c0_35 = arith.constant 0 : index
    %95 = vector.load %arg7[%c0_32, %c1_33, %c0_34, %c0_35] : memref<1x4x1x256xf32, #tpu.memory_space<vmem>>, vector<1x1x1x256xf32>
    %96 = vector.shape_cast %95 : vector<1x1x1x256xf32> to vector<1x256xf32>
    %97 = vector.shape_cast %94 : vector<1x256xf32> to vector<1x1x1x256xf32>
    tpu.vector_store %arg7[%c0_32, %c1_33, %c0_34, %c0_35], %97 {strides = array<i32>} : memref<1x4x1x256xf32, #tpu.memory_space<vmem>>, vector<1x1x1x256xf32>,
    %c0_36 = arith.constant 0 : index
    %c2 = arith.constant 2 : index
    %c0_37 = arith.constant 0 : index
    %98 = arith.index_cast %1 : i32 to index
    %99 = vector.load %arg5[%c0_36, %c2, %c0_37, %98] : memref<1x4x1x256xf32, #tpu.memory_space<vmem>>, vector<1x1x1x256xf32>
    %100 = vector.shape_cast %99 : vector<1x1x1x256xf32> to vector<1x256xf32>
    %cst_38 = arith.constant 0.000000e+00 : f32
    %101 = vector.broadcast %cst_38 : f32 to vector<1x256xf32>
    %102 = arith.cmpf oge, %100, %101 : vector<1x256xf32>
    %103 = vector.broadcast %4 : f32 to vector<1x256xf32>
    %104 = arith.mulf %100, %103 : vector<1x256xf32>
    %105 = vector.broadcast %6 : f32 to vector<1x256xf32>
    %106 = arith.mulf %100, %105 : vector<1x256xf32>
    %107 = arith.select %102, %104, %106 : vector<1x256xi1>, vector<1x256xf32>
    %cst_39 = arith.constant 0.000000e+00 : f32
    %108 = vector.broadcast %cst_39 : f32 to vector<2x256xf32>
    %c0_i32_40 = arith.constant 0 : i32
    %109 = tpu.assume_multiple %c0_i32_40, 256 : i32
    %c0_41 = arith.constant 0 : index
    %110 = arith.index_cast %109 : i32 to index
    %c0_42 = arith.constant 0 : index
    %111 = vector.load %arg6[%c0_41, %110, %c0_42] : memref<1x256x1xf32, #tpu.memory_space<vmem>>, vector<1x256x1xf32>
    %112 = vector.shape_cast %111 : vector<1x256x1xf32> to vector<256x1xf32>
    %113 = vector.broadcast %112 : vector<256x1xf32> to vector<256x256xf32>
    %114 = vector.broadcast %100 : vector<1x256xf32> to vector<256x256xf32>
    %115 = arith.mulf %113, %114 : vector<256x256xf32>
    %116 = vector.broadcast %107 : vector<1x256xf32> to vector<256x256xf32>
    %117 = arith.subf %115, %116 : vector<256x256xf32>
    %118 = math.exp %117 : vector<256x256xf32>
    %c0_43 = arith.constant 0 : index
    %c2_44 = arith.constant 2 : index
    %c0_45 = arith.constant 0 : index
    %119 = arith.index_cast %109 : i32 to index
    %120 = vector.load %arg5[%c0_43, %c2_44, %c0_45, %119] : memref<1x4x1x256xf32, #tpu.memory_space<vmem>>, vector<1x1x1x256xf32>
    %121 = vector.shape_cast %120 : vector<1x1x1x256xf32> to vector<1x256xf32>
    %122 = vector.shape_cast %121 : vector<1x256xf32> to vector<1x256xf32>
    %123 = vector.broadcast %122 : vector<1x256xf32> to vector<2x256xf32>
    %cst_46 = arith.constant 1.000000e+00 : f32
    %124 = vector.broadcast %cst_46 : f32 to vector<2x256xf32>
    %125 = arith.select %9, %123, %124 : vector<2x256xi1>, vector<2x256xf32>
    %cst_47 = arith.constant dense<0.000000e+00> : vector<2x256xf32>
    %126 = tpu.matmul %125, %118, %cst_47 {dimension_numbers = #tpu.dot_dimension_numbers<[1], [0], [0], [1], [0, 0, 1, 1], [], []>} : vector<2x256xf32>, vector<256x256xf32>, vector<2x256xf32> -> vector<2x256xf32>
    %127 = arith.addf %108, %126 : vector<2x256xf32>
    %128 = vector.extract_strided_slice %127 {offsets = [1, 0], sizes = [1, 256], strides = [1, 1]} : vector<2x256xf32> to vector<1x256xf32>
    %129 = tpu.reciprocal %128 {approx = true} : vector<1x256xf32> -> vector<1x256xf32>
    %130 = arith.mulf %128, %129 : vector<1x256xf32>
    %cst_48 = arith.constant 2.000000e+00 : f32
    %131 = vector.broadcast %cst_48 : f32 to vector<1x256xf32>
    %132 = arith.subf %131, %130 : vector<1x256xf32>
    %133 = arith.mulf %129, %132 : vector<1x256xf32>
    %134 = vector.extract_strided_slice %127 {offsets = [0, 0], sizes = [1, 256], strides = [1, 1]} : vector<2x256xf32> to vector<1x256xf32>
    %135 = vector.broadcast %2 : f32 to vector<1x256xf32>
    %136 = arith.mulf %135, %134 : vector<1x256xf32>
    %137 = arith.mulf %136, %133 : vector<1x256xf32>
    %138 = arith.addf %137, %100 : vector<1x256xf32>
    %c0_49 = arith.constant 0 : index
    %c2_50 = arith.constant 2 : index
    %c0_51 = arith.constant 0 : index
    %c0_52 = arith.constant 0 : index
    %139 = vector.load %arg7[%c0_49, %c2_50, %c0_51, %c0_52] : memref<1x4x1x256xf32, #tpu.memory_space<vmem>>, vector<1x1x1x256xf32>
    %140 = vector.shape_cast %139 : vector<1x1x1x256xf32> to vector<1x256xf32>
    %141 = vector.shape_cast %138 : vector<1x256xf32> to vector<1x1x1x256xf32>
    tpu.vector_store %arg7[%c0_49, %c2_50, %c0_51, %c0_52], %141 {strides = array<i32>} : memref<1x4x1x256xf32, #tpu.memory_space<vmem>>, vector<1x1x1x256xf32>,
    %c0_53 = arith.constant 0 : index
    %c3 = arith.constant 3 : index
    %c0_54 = arith.constant 0 : index
    %142 = arith.index_cast %1 : i32 to index
    %143 = vector.load %arg5[%c0_53, %c3, %c0_54, %142] : memref<1x4x1x256xf32, #tpu.memory_space<vmem>>, vector<1x1x1x256xf32>
    %144 = vector.shape_cast %143 : vector<1x1x1x256xf32> to vector<1x256xf32>
    %cst_55 = arith.constant 0.000000e+00 : f32
    %145 = vector.broadcast %cst_55 : f32 to vector<1x256xf32>
    %146 = arith.cmpf oge, %144, %145 : vector<1x256xf32>
    %147 = vector.broadcast %4 : f32 to vector<1x256xf32>
    %148 = arith.mulf %144, %147 : vector<1x256xf32>
    %149 = vector.broadcast %6 : f32 to vector<1x256xf32>
    %150 = arith.mulf %144, %149 : vector<1x256xf32>
    %151 = arith.select %146, %148, %150 : vector<1x256xi1>, vector<1x256xf32>
    %cst_56 = arith.constant 0.000000e+00 : f32
    %152 = vector.broadcast %cst_56 : f32 to vector<2x256xf32>
    %c0_i32_57 = arith.constant 0 : i32
    %153 = tpu.assume_multiple %c0_i32_57, 256 : i32
    %c0_58 = arith.constant 0 : index
    %154 = arith.index_cast %153 : i32 to index
    %c0_59 = arith.constant 0 : index
    %155 = vector.load %arg6[%c0_58, %154, %c0_59] : memref<1x256x1xf32, #tpu.memory_space<vmem>>, vector<1x256x1xf32>
    %156 = vector.shape_cast %155 : vector<1x256x1xf32> to vector<256x1xf32>
    %157 = vector.broadcast %156 : vector<256x1xf32> to vector<256x256xf32>
    %158 = vector.broadcast %144 : vector<1x256xf32> to vector<256x256xf32>
    %159 = arith.mulf %157, %158 : vector<256x256xf32>
    %160 = vector.broadcast %151 : vector<1x256xf32> to vector<256x256xf32>
    %161 = arith.subf %159, %160 : vector<256x256xf32>
    %162 = math.exp %161 : vector<256x256xf32>
    %c0_60 = arith.constant 0 : index
    %c3_61 = arith.constant 3 : index
    %c0_62 = arith.constant 0 : index
    %163 = arith.index_cast %153 : i32 to index
    %164 = vector.load %arg5[%c0_60, %c3_61, %c0_62, %163] : memref<1x4x1x256xf32, #tpu.memory_space<vmem>>, vector<1x1x1x256xf32>
    %165 = vector.shape_cast %164 : vector<1x1x1x256xf32> to vector<1x256xf32>
    %166 = vector.shape_cast %165 : vector<1x256xf32> to vector<1x256xf32>
    %167 = vector.broadcast %166 : vector<1x256xf32> to vector<2x256xf32>
    %cst_63 = arith.constant 1.000000e+00 : f32
    %168 = vector.broadcast %cst_63 : f32 to vector<2x256xf32>
    %169 = arith.select %9, %167, %168 : vector<2x256xi1>, vector<2x256xf32>
    %cst_64 = arith.constant dense<0.000000e+00> : vector<2x256xf32>
    %170 = tpu.matmul %169, %162, %cst_64 {dimension_numbers = #tpu.dot_dimension_numbers<[1], [0], [0], [1], [0, 0, 1, 1], [], []>} : vector<2x256xf32>, vector<256x256xf32>, vector<2x256xf32> -> vector<2x256xf32>
    %171 = arith.addf %152, %170 : vector<2x256xf32>
    %172 = vector.extract_strided_slice %171 {offsets = [1, 0], sizes = [1, 256], strides = [1, 1]} : vector<2x256xf32> to vector<1x256xf32>
    %173 = tpu.reciprocal %172 {approx = true} : vector<1x256xf32> -> vector<1x256xf32>
    %174 = arith.mulf %172, %173 : vector<1x256xf32>
    %cst_65 = arith.constant 2.000000e+00 : f32
    %175 = vector.broadcast %cst_65 : f32 to vector<1x256xf32>
    %176 = arith.subf %175, %174 : vector<1x256xf32>
    %177 = arith.mulf %173, %176 : vector<1x256xf32>
    %178 = vector.extract_strided_slice %171 {offsets = [0, 0], sizes = [1, 256], strides = [1, 1]} : vector<2x256xf32> to vector<1x256xf32>
    %179 = vector.broadcast %2 : f32 to vector<1x256xf32>
    %180 = arith.mulf %179, %178 : vector<1x256xf32>
    %181 = arith.mulf %180, %177 : vector<1x256xf32>
    %182 = arith.addf %181, %144 : vector<1x256xf32>
    %c0_66 = arith.constant 0 : index
    %c3_67 = arith.constant 3 : index
    %c0_68 = arith.constant 0 : index
    %c0_69 = arith.constant 0 : index
    %183 = vector.load %arg7[%c0_66, %c3_67, %c0_68, %c0_69] : memref<1x4x1x256xf32, #tpu.memory_space<vmem>>, vector<1x1x1x256xf32>
    %184 = vector.shape_cast %183 : vector<1x1x1x256xf32> to vector<1x256xf32>
    %185 = vector.shape_cast %182 : vector<1x256xf32> to vector<1x1x1x256xf32>
    tpu.vector_store %arg7[%c0_66, %c3_67, %c0_68, %c0_69], %185 {strides = array<i32>} : memref<1x4x1x256xf32, #tpu.memory_space<vmem>>, vector<1x1x1x256xf32>,
    return
  }
  func.func @transform_0(%arg0: i32, %arg1: i32, %arg2: i32) -> (i32, i32) {
    %c0_i32 = arith.constant 0 : i32
    %c0_i32_0 = arith.constant 0 : i32
    %c0_i32_1 = arith.constant 0 : i32
    return %c0_i32, %c0_i32_0 : i32, i32
  }
  func.func @transform_1(%arg0: i32, %arg1: i32, %arg2: i32) -> i32 {
    %c0_i32 = arith.constant 0 : i32
    %c0_i32_0 = arith.constant 0 : i32
    return %c0_i32 : i32
  }
  func.func @transform_2(%arg0: i32, %arg1: i32, %arg2: i32) -> (i32, i32, i32, i32) {
    %c0_i32 = arith.constant 0 : i32
    %c0_i32_0 = arith.constant 0 : i32
    %c0_i32_1 = arith.constant 0 : i32
    return %arg0, %arg1, %c0_i32, %c0_i32_0 : i32, i32, i32, i32
  }
  func.func @transform_3(%arg0: i32, %arg1: i32, %arg2: i32) -> (i32, i32, i32) {
    %c0_i32 = arith.constant 0 : i32
    %c0_i32_0 = arith.constant 0 : i32
    %c0_i32_1 = arith.constant 0 : i32
    return %arg0, %c0_i32, %c0_i32_0 : i32, i32, i32
  }
  func.func @transform_4(%arg0: i32, %arg1: i32, %arg2: i32) -> (i32, i32, i32, i32) {
    %c0_i32 = arith.constant 0 : i32
    %c0_i32_0 = arith.constant 0 : i32
    return %arg0, %arg1, %c0_i32, %arg2 : i32, i32, i32, i32
  }
}

</mosaic_0001>

<llo_original>
// kernel: tpu_custom_call.1
$region0: #{tpu_custom_call.1}
  #allocation0 [shape = 'u32[]', space=smem, size = 0x4, offset = 0x4, fixed_abs, tag = 'smem constant byte address 0x4 - core index']
  #allocation1 [shape = 'u32[144,128]{1,0:T(1,128)}', space=vmem, size = 0x12000, scoped, tag = 'internal scratch']
  #allocation2 [shape = 'f32[1]{0:T(128)S(6)}', space=smem, size = 0x200, scoped, tag = 'scoped memory for tpu_custom_call.1']
  %s0 = inlined_call_operand.vmem [shape: f32[2,2], index: 0, kind: input, shape index: {}]
  %s1 = inlined_call_operand.<no memory space> [shape: f32[1], index: 1, kind: input, shape index: {}]
  %s2 = inlined_call_operand.vmem [shape: f32[2,4,1,256], index: 2, kind: input, shape index: {}]
  %s3 = inlined_call_operand.vmem [shape: f32[2,256,1], index: 3, kind: input, shape index: {}]
  %s4 = inlined_call_operand.hbm [shape: f32[2,4,1,256], index: 4, kind: output, shape index: {}]
  %s5 = sld [smem:[#allocation0]]
  $region53: #{tpu_custom_call.1} parent=0
    _
  %s7 = ssub.s32 1, %s5
  %s8 = scalar_select 0, %s7, %s5
  %9 = sst [smem:[#allocation2]] %s1
  $region1: #{tpu_custom_call.1} parent=0
    #allocation3 [shape = 'u8[1024]{0}', space=smem, size = 0x400, scoped, tag = 'input window, operand 0, single buffered']
    #allocation4 [shape = 's32[2]{0}', space=sflag, size = 0x8, scoped, tag = 'scoped memory for tpu_custom_call.1']
    #allocation5 [shape = 's32[2]{0}', space=sflag, size = 0x8, scoped, tag = 'scoped memory for tpu_custom_call.1']
    #allocation6 [shape = 'u8[8192]{0}', space=vmem, size = 0x2000, scoped, tag = 'output window, operand 0']
    %10 = vsyncpa [#allocation5], 0
    %11 = vsyncpa [#allocation4], 0
    %s12 = scalar_lea.sflag [#allocation4], 1
    %13 = vsyncpa %s12, 0
    loop: start=0, step=1, limit=4
    $region2: #{tpu_custom_call.1} parent=1 // loop_pre_header
      _
    $region3: #{tpu_custom_call.1} parent=1 // loop_header
      %s15 = sphi 0, %s19
      %p16 = scmp.ge.s32.totalorder %s15, 4
      %s22 = sphi 0, %s41
      %s23 = sphi 0, %s37
      %s24 = sphi 0, %s33
      %s25 = sphi 0, %s22
      %s26 = sphi 0, %s23
      %s27 = sphi 0, %s24
      %s28 = sphi 0, %s25
      %s29 = sphi 0, %s26
      %s30 = sphi 0, %s27
      %s42 = sphi 0, %s42
      %s44 = sphi 0, %s42
      %s45 = sphi 0, %s44
      %s59 = sphi 0, %s45
      %s63 = sphi 0, %s63
      %s65 = sphi 0, %s63
      %s66 = sphi 0, %s65
      %s80 = sphi 0, %s66
      %s88 = sphi 0, %s90
      %s91 = sphi 0, %s88
      %s92 = sphi 0, %s91
      %s108 = sphi 0, %s92
      %s114 = sphi 0, %s116
      %s117 = sphi 0, %s114
      %s118 = sphi 0, %s117
      %s134 = sphi 0, %s118
      %s144 = sphi 0, %s146
      %s147 = sphi 0, %s144
      %s148 = sphi 0, %s147
      %s164 = sphi 0, %s148
    $region4: #{tpu_custom_call.1} parent=1 // loop_header_branch
      %18 = sbr.rel (%p16) target = $region8
    $region5: #{tpu_custom_call.1} parent=1 // loop_body
      %s20 = ssub.s32 %s15, 1
      %s21 = ssub.s32 %s15, 2
      %s31 = sadd.s32 1, %s24
      %p32 = scmp.ge.s32.totalorder %s31, 1
      %s33 = scalar_select %p32, 0, %s31
      %s34 = sadd.s32 1, %s23
      %s35 = scalar_select %p32, %s34, %s23
      %p36 = scmp.ge.s32.totalorder %s35, 1
      %s37 = scalar_select %p36, 0, %s35
      %s38 = sadd.s32 1, %s22
      %s39 = scalar_select %p36, %s38, %s22
      %p40 = scmp.ge.s32.totalorder %s39, 2
      %s41 = scalar_select %p40, 0, %s39
      %s43 = sadd.s32 %s42, 1
      %p46 = scmp.eq.s32.totalorder %s15, 1
      %p47 = scmp.ne.s32.totalorder %s42, %s44
      %p48 = scmp.eq.s32.totalorder %s15, 0
      %p49 = por %p47, %p48
      %p50 = scmp.ne.s32.totalorder %s42, %s44
      %p51 = scmp.eq.s32.totalorder %s20, 1
      %p52 = por %p50, %p51
      %p53 = scmp.ne.s32.totalorder %s44, %s45
      %p54 = scmp.eq.s32.totalorder %s20, 0
      %p55 = por %p53, %p54
      %p56 = scmp.ne.s32.totalorder %s44, %s45
      %p57 = scmp.eq.s32.totalorder %s21, 1
      %p58 = por %p56, %p57
      %p60 = scmp.ne.s32.totalorder %s45, %s59
      %p61 = scmp.eq.s32.totalorder %s21, 0
      %p62 = por %p60, %p61
      %s64 = sadd.s32 %s63, 1
      %p67 = scmp.eq.s32.totalorder %s15, 1
      %p68 = scmp.ne.s32.totalorder %s63, %s65
      %p69 = scmp.eq.s32.totalorder %s15, 0
      %p70 = por %p68, %p69
      %p71 = scmp.ne.s32.totalorder %s63, %s65
      %p72 = scmp.eq.s32.totalorder %s20, 1
      %p73 = por %p71, %p72
      %p74 = scmp.ne.s32.totalorder %s65, %s66
      %p75 = scmp.eq.s32.totalorder %s20, 0
      %p76 = por %p74, %p75
      %p77 = scmp.ne.s32.totalorder %s65, %s66
      %p78 = scmp.eq.s32.totalorder %s21, 1
      %p79 = por %p77, %p78
      %p81 = scmp.ne.s32.totalorder %s66, %s80
      %p82 = scmp.eq.s32.totalorder %s21, 0
      %p83 = por %p81, %p82
      %s84 = ssub.s32 %s22, %s41
      %s85 = ssub.s32 %s23, %s37
      %s86 = sor.u32 %s84, %s85
      %p87 = scmp.eq.s32.totalorder %s86, 0
      %s89 = sadd.s32 %s88, 1
      %s90 = scalar_select %p87, %s88, %s89
      %p93 = pneg %p87
      %p94 = scmp.eq.s32.totalorder %s15, 1
      %p95 = por %p93, %p94
      %p96 = scmp.ne.s32.totalorder %s88, %s91
      %p97 = scmp.eq.s32.totalorder %s15, 0
      %p98 = por %p96, %p97
      %p99 = scmp.ne.s32.totalorder %s88, %s91
      %p100 = scmp.eq.s32.totalorder %s20, 1
      %p101 = por %p99, %p100
      %p102 = scmp.ne.s32.totalorder %s91, %s92
      %p103 = scmp.eq.s32.totalorder %s20, 0
      %p104 = por %p102, %p103
      %p105 = scmp.ne.s32.totalorder %s91, %s92
      %p106 = scmp.eq.s32.totalorder %s21, 1
      %p107 = por %p105, %p106
      %p109 = scmp.ne.s32.totalorder %s92, %s108
      %p110 = scmp.eq.s32.totalorder %s21, 0
      %p111 = por %p109, %p110
      %s112 = ssub.s32 %s22, %s41
      %p113 = scmp.eq.s32.totalorder %s112, 0
      %s115 = sadd.s32 %s114, 1
      %s116 = scalar_select %p113, %s114, %s115
      %p119 = pneg %p113
      %p120 = scmp.eq.s32.totalorder %s15, 1
      %p121 = por %p119, %p120
      %p122 = scmp.ne.s32.totalorder %s114, %s117
      %p123 = scmp.eq.s32.totalorder %s15, 0
      %p124 = por %p122, %p123
      %p125 = scmp.ne.s32.totalorder %s114, %s117
      %p126 = scmp.eq.s32.totalorder %s20, 1
      %p127 = por %p125, %p126
      %p128 = scmp.ne.s32.totalorder %s117, %s118
      %p129 = scmp.eq.s32.totalorder %s20, 0
      %p130 = por %p128, %p129
      %p131 = scmp.ne.s32.totalorder %s117, %s118
      %p132 = scmp.eq.s32.totalorder %s21, 1
      %p133 = por %p131, %p132
      %p135 = scmp.ne.s32.totalorder %s118, %s134
      %p136 = scmp.eq.s32.totalorder %s21, 0
      %p137 = por %p135, %p136
      %s138 = ssub.s32 %s22, %s41
      %s139 = ssub.s32 %s23, %s37
      %s140 = sor.u32 %s138, %s139
      %s141 = ssub.s32 %s24, %s33
      %s142 = sor.u32 %s140, %s141
      %p143 = scmp.eq.s32.totalorder %s142, 0
      %s145 = sadd.s32 %s144, 1
      %s146 = scalar_select %p143, %s144, %s145
      %p149 = pneg %p143
      %p150 = scmp.eq.s32.totalorder %s15, 1
      %p151 = por %p149, %p150
      %p152 = scmp.ne.s32.totalorder %s144, %s147
      %p153 = scmp.eq.s32.totalorder %s15, 0
      %p154 = por %p152, %p153
      %p155 = scmp.ne.s32.totalorder %s144, %s147
      %p156 = scmp.eq.s32.totalorder %s20, 1
      %p157 = por %p155, %p156
      %p158 = scmp.ne.s32.totalorder %s147, %s148
      %p159 = scmp.eq.s32.totalorder %s20, 0
      %p160 = por %p158, %p159
      %p161 = scmp.ne.s32.totalorder %s147, %s148
      %p162 = scmp.eq.s32.totalorder %s21, 1
      %p163 = por %p161, %p162
      %p165 = scmp.ne.s32.totalorder %s148, %s164
      %p166 = scmp.eq.s32.totalorder %s21, 0
      %p167 = por %p165, %p166
      %p168 = scmp.le.s32.totalorder 1, %s15
      %p169 = scmp.lt.s32.totalorder %s15, 3
      %p170 = pnand %p168, %p169
      %p171 = pneg %p170
      // Predicated region
      $region9: #{tpu_custom_call.1} parent=5 // pred_check
        _
      $region10: #{tpu_custom_call.1} parent=5 // pred_check_branch
        %173 = sbr.rel (%p170) target = $region12
      $region11: #{tpu_custom_call.1} parent=5 // pred_region
        %s174 = ssub.s32 %s15, 1
        // Predicated region
        $region13: #{tpu_custom_call.1} parent=11 // pred_check
          %p175 = pneg %p55
        $region14: #{tpu_custom_call.1} parent=11 // pred_check_branch
          %177 = sbr.rel (%p175) target = $region16
        $region15: #{tpu_custom_call.1} parent=11 // pred_region
          %s179 = ssub.s32 32, 32
          %180 = vsyncadd [#allocation5], %s179
          %s182 = sshll.u32 %s0, 4
          %s183 = int_to_ptr.vmem [resolvable:$true] %s182
          %185 = dma.vmem_to_smem %s183, 32, [#allocation3], [#allocation5]
        $region16: #{tpu_custom_call.1} parent=11 // pred_fallthru
          _
        // Predicated region
        $region17: #{tpu_custom_call.1} parent=11 // pred_check
          %p186 = pneg %p76
        $region18: #{tpu_custom_call.1} parent=11 // pred_check_branch
          %188 = sbr.rel (%p186) target = $region20
        $region19: #{tpu_custom_call.1} parent=11 // pred_region
          _
        $region20: #{tpu_custom_call.1} parent=11 // pred_fallthru
          _
      $region12: #{tpu_custom_call.1} parent=5 // pred_fallthru
        _
      %p189 = scmp.lt.s32.totalorder %s15, 2
      // Predicated region
      $region21: #{tpu_custom_call.1} parent=5 // pred_check
        %p190 = pneg %p189
      $region22: #{tpu_custom_call.1} parent=5 // pred_check_branch
        %192 = sbr.rel (%p190) target = $region24
      $region23: #{tpu_custom_call.1} parent=5 // pred_region
        // Predicated region
        $region25: #{tpu_custom_call.1} parent=23 // pred_check
          %p193 = pneg %p98
        $region26: #{tpu_custom_call.1} parent=23 // pred_check_branch
          %195 = sbr.rel (%p193) target = $region28
        $region27: #{tpu_custom_call.1} parent=23 // pred_region
          %s196 = smul.u32 4, %s23
          %p197 = scmp.lt.s32.totalorder %s22, 1
          %s198 = scalar_select %p197, %s22, 1
          %p199 = scmp.lt.s32.totalorder %s196, 3
          %s200 = scalar_select %p199, %s196, 3
          %s201 = smul.addr %s200, 2
          %s202 = smul.addr %s198, 8
          %s203 = sadd.s32 %s201, %s202
          %s204 = scalar_lea.vmem %s2, %s203
          %s205 = smul.u32 4, %s23
        $region28: #{tpu_custom_call.1} parent=23 // pred_fallthru
          _
        // Predicated region
        $region29: #{tpu_custom_call.1} parent=23 // pred_check
          %p206 = pneg %p124
        $region30: #{tpu_custom_call.1} parent=23 // pred_check_branch
          %208 = sbr.rel (%p206) target = $region32
        $region31: #{tpu_custom_call.1} parent=23 // pred_region
          %p209 = scmp.lt.s32.totalorder %s22, 1
          %s210 = scalar_select %p209, %s22, 1
          %s211 = smul.addr %s210, 32
          %s212 = smul.addr %s211, 8
          %s213 = scalar_lea.vmem %s3, %s212
        $region32: #{tpu_custom_call.1} parent=23 // pred_fallthru
          _
      $region24: #{tpu_custom_call.1} parent=5 // pred_fallthru
        _
      %p214 = scmp.le.s32.totalorder 1, %s15
      %p215 = scmp.lt.s32.totalorder %s15, 3
      %p216 = pnand %p214, %p215
      %p217 = pneg %p216
      // Predicated region
      $region33: #{tpu_custom_call.1} parent=5 // pred_check
        _
      $region34: #{tpu_custom_call.1} parent=5 // pred_check_branch
        %219 = sbr.rel (%p216) target = $region36
      $region35: #{tpu_custom_call.1} parent=5 // pred_region
        %s220 = ssub.s32 %s15, 1
        // Predicated region
        $region37: #{tpu_custom_call.1} parent=35 // pred_check
          %p221 = pneg %p55
        $region38: #{tpu_custom_call.1} parent=35 // pred_check_branch
          %223 = sbr.rel (%p221) target = $region40
        $region39: #{tpu_custom_call.1} parent=35 // pred_region
          %224 = dma.done [#allocation5], 32
        $region40: #{tpu_custom_call.1} parent=35 // pred_fallthru
          _
        %225 = sfence
        %p226 = pneg %p55
        %p227 = pneg %p52
        %p228 = pneg %p76
        %p229 = pneg %p73
        %s230 = smul.u32 4, %s26
        %p231 = scmp.lt.s32.totalorder %s25, 1
        %s232 = scalar_select %p231, %s25, 1
        %p233 = scmp.lt.s32.totalorder %s230, 3
        %s234 = scalar_select %p233, %s230, 3
        %s235 = smul.addr %s234, 2
        %s236 = smul.addr %s232, 8
        %s237 = sadd.s32 %s235, %s236
        %s238 = scalar_lea.vmem %s2, %s237
        %p239 = pneg %p104
        %p240 = pneg %p101
        %p241 = scmp.lt.s32.totalorder %s25, 1
        %s242 = scalar_select %p241, %s25, 1
        %s243 = smul.addr %s242, 32
        %s244 = smul.addr %s243, 8
        %s245 = scalar_lea.vmem %s3, %s244
        %p246 = pneg %p130
        %p247 = pneg %p127
        %p248 = pneg %p160
        %p249 = pneg %p157
        %s250 = sand.u32 %s147, 1
        %s251 = scalar_lea.sflag [#allocation4], %s250
        %s252 = sand.u32 %s147, 1
        %s253 = smul.addr %s252, 8
        %s254 = scalar_lea.vmem [#allocation6], %s253
        %s255 = smul.u32 4, %s26
        %p256 = scmp.lt.s32.totalorder %s25, 1
        %s257 = scalar_select %p256, %s25, 1
        %p258 = scmp.lt.s32.totalorder %s255, 3
        %s259 = scalar_select %p258, %s255, 3
        %s260 = smul.addr %s259, 2
        %s261 = smul.addr %s257, 8
        %s262 = sadd.s32 %s260, %s261
        %s263 = scalar_lea.vmem %s2, %s262
        %s264 = smul.u32 4, %s26
        %p265 = scmp.lt.s32.totalorder %s25, 1
        %s266 = scalar_select %p265, %s25, 1
        %s267 = smul.addr %s266, 32
        %s268 = smul.addr %s267, 8
        %s269 = scalar_lea.vmem %s3, %s268
        %s270 = smul.u32 4, %s26
        %s271 = smul.u32 2, %s27
        %s272 = smul.u32 %s27, 256
        %s273 = sld [smem:[#allocation2]]
        %s274 = smul.u32 %s25, 128
        %s275 = sld [smem:[#allocation3 + %s274]]
        %s276 = sadd.s32 %s274, 1
        %s277 = sld [smem:[#allocation3 + %s276]]
        %v278 = vlaneseq
        %v279 = vshrl.u32 %v278, 7
        %vm280 = vcmp.eq.s32.totalorder %v279, 0
        %s281 = sshra.s32 %s272, 7
        %s282 = sand.u32 %s272, 127
        %s283 = scalar_lea.vmem %s263, %s281
        %v284 = vld [vmem:[%s283] sm:$0x3]
        %vm285 = vcmp.ge.f32.partialorder %v284, 0.0
        %v286 = vstv %s275
        %v287 = vmul.f32 %v284, %v286
        %v288 = vstv %s277
        %v289 = vmul.f32 %v284, %v288
        %v290 = vsel %vm285, %v287, %v289
        %v291 = vld [vmem:[%s269] sm:$0xff]
        %v292 = vld [vmem:[%s269 + $0x8] sm:$0xff]
        %v293 = vld [vmem:[%s269 + $0x10] sm:$0xff]
        %v294 = vld [vmem:[%s269 + $0x18] sm:$0xff]
        %v295 = vld [vmem:[%s269 + $0x20] sm:$0xff]
        %v296 = vld [vmem:[%s269 + $0x28] sm:$0xff]
        %v297 = vld [vmem:[%s269 + $0x30] sm:$0xff]
        %v298 = vld [vmem:[%s269 + $0x38] sm:$0xff]
        %v299 = vld [vmem:[%s269 + $0x40] sm:$0xff]
        %v300 = vld [vmem:[%s269 + $0x48] sm:$0xff]
        %v301 = vld [vmem:[%s269 + $0x50] sm:$0xff]
        %v302 = vld [vmem:[%s269 + $0x58] sm:$0xff]
        %v303 = vld [vmem:[%s269 + $0x60] sm:$0xff]
        %v304 = vld [vmem:[%s269 + $0x68] sm:$0xff]
        %v305 = vld [vmem:[%s269 + $0x70] sm:$0xff]
        %v306 = vld [vmem:[%s269 + $0x78] sm:$0xff]
        %v307 = vld [vmem:[%s269 + $0x80] sm:$0xff]
        %v308 = vld [vmem:[%s269 + $0x88] sm:$0xff]
        %v309 = vld [vmem:[%s269 + $0x90] sm:$0xff]
        %v310 = vld [vmem:[%s269 + $0x98] sm:$0xff]
        %v311 = vld [vmem:[%s269 + $0xa0] sm:$0xff]
        %v312 = vld [vmem:[%s269 + $0xa8] sm:$0xff]
        %v313 = vld [vmem:[%s269 + $0xb0] sm:$0xff]
        %v314 = vld [vmem:[%s269 + $0xb8] sm:$0xff]
        %v315 = vld [vmem:[%s269 + $0xc0] sm:$0xff]
        %v316 = vld [vmem:[%s269 + $0xc8] sm:$0xff]
        %v317 = vld [vmem:[%s269 + $0xd0] sm:$0xff]
        %v318 = vld [vmem:[%s269 + $0xd8] sm:$0xff]
        %v319 = vld [vmem:[%s269 + $0xe0] sm:$0xff]
        %v320 = vld [vmem:[%s269 + $0xe8] sm:$0xff]
        %v321 = vld [vmem:[%s269 + $0xf0] sm:$0xff]
        %v322 = vld [vmem:[%s269 + $0xf8] sm:$0xff]
        %324 = vset.pattern.permute.xlu0 0
        %325 = vperm.xlu0 %324, %v291
        %v326 = vpop.permute.xlu0 %325
        %329 = vset.pattern.permute.xlu0 0
        %330 = vperm.xlu0 %329, %v292
        %v331 = vpop.permute.xlu0 %330
        %334 = vset.pattern.permute.xlu0 0
        %335 = vperm.xlu0 %334, %v293
        %v336 = vpop.permute.xlu0 %335
        %339 = vset.pattern.permute.xlu0 0
        %340 = vperm.xlu0 %339, %v294
        %v341 = vpop.permute.xlu0 %340
        %344 = vset.pattern.permute.xlu0 0
        %345 = vperm.xlu0 %344, %v295
        %v346 = vpop.permute.xlu0 %345
        %349 = vset.pattern.permute.xlu0 0
        %350 = vperm.xlu0 %349, %v296
        %v351 = vpop.permute.xlu0 %350
        %354 = vset.pattern.permute.xlu0 0
        %355 = vperm.xlu0 %354, %v297
        %v356 = vpop.permute.xlu0 %355
        %359 = vset.pattern.permute.xlu0 0
        %360 = vperm.xlu0 %359, %v298
        %v361 = vpop.permute.xlu0 %360
        %364 = vset.pattern.permute.xlu0 0
        %365 = vperm.xlu0 %364, %v299
        %v366 = vpop.permute.xlu0 %365
        %369 = vset.pattern.permute.xlu0 0
        %370 = vperm.xlu0 %369, %v300
        %v371 = vpop.permute.xlu0 %370
        %374 = vset.pattern.permute.xlu0 0
        %375 = vperm.xlu0 %374, %v301
        %v376 = vpop.permute.xlu0 %375
        %379 = vset.pattern.permute.xlu0 0
        %380 = vperm.xlu0 %379, %v302
        %v381 = vpop.permute.xlu0 %380
        %384 = vset.pattern.permute.xlu0 0
        %385 = vperm.xlu0 %384, %v303
        %v386 = vpop.permute.xlu0 %385
        %389 = vset.pattern.permute.xlu0 0
        %390 = vperm.xlu0 %389, %v304
        %v391 = vpop.permute.xlu0 %390
        %394 = vset.pattern.permute.xlu0 0
        %395 = vperm.xlu0 %394, %v305
        %v396 = vpop.permute.xlu0 %395
        %399 = vset.pattern.permute.xlu0 0
        %400 = vperm.xlu0 %399, %v306
        %v401 = vpop.permute.xlu0 %400
        %404 = vset.pattern.permute.xlu0 0
        %405 = vperm.xlu0 %404, %v307
        %v406 = vpop.permute.xlu0 %405
        %409 = vset.pattern.permute.xlu0 0
        %410 = vperm.xlu0 %409, %v308
        %v411 = vpop.permute.xlu0 %410
        %414 = vset.pattern.permute.xlu0 0
        %415 = vperm.xlu0 %414, %v309
        %v416 = vpop.permute.xlu0 %415
        %419 = vset.pattern.permute.xlu0 0
        %420 = vperm.xlu0 %419, %v310
        %v421 = vpop.permute.xlu0 %420
        %424 = vset.pattern.permute.xlu0 0
        %425 = vperm.xlu0 %424, %v311
        %v426 = vpop.permute.xlu0 %425
        %429 = vset.pattern.permute.xlu0 0
        %430 = vperm.xlu0 %429, %v312
        %v431 = vpop.permute.xlu0 %430
        %434 = vset.pattern.permute.xlu0 0
        %435 = vperm.xlu0 %434, %v313
        %v436 = vpop.permute.xlu0 %435
        %439 = vset.pattern.permute.xlu0 0
        %440 = vperm.xlu0 %439, %v314
        %v441 = vpop.permute.xlu0 %440
        %444 = vset.pattern.permute.xlu0 0
        %445 = vperm.xlu0 %444, %v315
        %v446 = vpop.permute.xlu0 %445
        %449 = vset.pattern.permute.xlu0 0
        %450 = vperm.xlu0 %449, %v316
        %v451 = vpop.permute.xlu0 %450
        %454 = vset.pattern.permute.xlu0 0
        %455 = vperm.xlu0 %454, %v317
        %v456 = vpop.permute.xlu0 %455
        %459 = vset.pattern.permute.xlu0 0
        %460 = vperm.xlu0 %459, %v318
        %v461 = vpop.permute.xlu0 %460
        %464 = vset.pattern.permute.xlu0 0
        %465 = vperm.xlu0 %464, %v319
        %v466 = vpop.permute.xlu0 %465
        %469 = vset.pattern.permute.xlu0 0
        %470 = vperm.xlu0 %469, %v320
        %v471 = vpop.permute.xlu0 %470
        %474 = vset.pattern.permute.xlu0 0
        %475 = vperm.xlu0 %474, %v321
        %v476 = vpop.permute.xlu0 %475
        %479 = vset.pattern.permute.xlu0 0
        %480 = vperm.xlu0 %479, %v322
        %v481 = vpop.permute.xlu0 %480
        %v484 = vlaneseq
        %v485 = vshrl.u32 %v484, 7
        %v486 = vsub.s32 0, %v485
        %v487 = vrot.slane %v284, %v486
        %v488 = vlaneseq
        %v489 = vshrl.u32 %v488, 7
        %v490 = vsub.s32 1, %v489
        %v491 = vrot.slane %v284, %v490
        %v494 = vmul.f32 %v326, %v487
        %v495 = vmul.f32 %v326, %v491
        %v496 = vmul.f32 %v331, %v487
        %v497 = vmul.f32 %v331, %v491
        %v498 = vmul.f32 %v336, %v487
        %v499 = vmul.f32 %v336, %v491
        %v500 = vmul.f32 %v341, %v487
        %v501 = vmul.f32 %v341, %v491
        %v502 = vmul.f32 %v346, %v487
        %v503 = vmul.f32 %v346, %v491
        %v504 = vmul.f32 %v351, %v487
        %v505 = vmul.f32 %v351, %v491
        %v506 = vmul.f32 %v356, %v487
        %v507 = vmul.f32 %v356, %v491
        %v508 = vmul.f32 %v361, %v487
        %v509 = vmul.f32 %v361, %v491
        %v510 = vmul.f32 %v366, %v487
        %v511 = vmul.f32 %v366, %v491
        %v512 = vmul.f32 %v371, %v487
        %v513 = vmul.f32 %v371, %v491
        %v514 = vmul.f32 %v376, %v487
        %v515 = vmul.f32 %v376, %v491
        %v516 = vmul.f32 %v381, %v487
        %v517 = vmul.f32 %v381, %v491
        %v518 = vmul.f32 %v386, %v487
        %v519 = vmul.f32 %v386, %v491
        %v520 = vmul.f32 %v391, %v487
        %v521 = vmul.f32 %v391, %v491
        %v522 = vmul.f32 %v396, %v487
        %v523 = vmul.f32 %v396, %v491
        %v524 = vmul.f32 %v401, %v487
        %v525 = vmul.f32 %v401, %v491
        %v526 = vmul.f32 %v406, %v487
        %v527 = vmul.f32 %v406, %v491
        %v528 = vmul.f32 %v411, %v487
        %v529 = vmul.f32 %v411, %v491
        %v530 = vmul.f32 %v416, %v487
        %v531 = vmul.f32 %v416, %v491
        %v532 = vmul.f32 %v421, %v487
        %v533 = vmul.f32 %v421, %v491
        %v534 = vmul.f32 %v426, %v487
        %v535 = vmul.f32 %v426, %v491
        %v536 = vmul.f32 %v431, %v487
        %v537 = vmul.f32 %v431, %v491
        %v538 = vmul.f32 %v436, %v487
        %v539 = vmul.f32 %v436, %v491
        %v540 = vmul.f32 %v441, %v487
        %v541 = vmul.f32 %v441, %v491
        %v542 = vmul.f32 %v446, %v487
        %v543 = vmul.f32 %v446, %v491
        %v544 = vmul.f32 %v451, %v487
        %v545 = vmul.f32 %v451, %v491
        %v546 = vmul.f32 %v456, %v487
        %v547 = vmul.f32 %v456, %v491
        %v548 = vmul.f32 %v461, %v487
        %v549 = vmul.f32 %v461, %v491
        %v550 = vmul.f32 %v466, %v487
        %v551 = vmul.f32 %v466, %v491
        %v552 = vmul.f32 %v471, %v487
        %v553 = vmul.f32 %v471, %v491
        %v554 = vmul.f32 %v476, %v487
        %v555 = vmul.f32 %v476, %v491
        %v556 = vmul.f32 %v481, %v487
        %v557 = vmul.f32 %v481, %v491
        %v559 = vlaneseq
        %v560 = vshrl.u32 %v559, 7
        %v561 = vsub.s32 0, %v560
        %v562 = vrot.slane %v290, %v561
        %v563 = vlaneseq
        %v564 = vshrl.u32 %v563, 7
        %v565 = vsub.s32 1, %v564
        %v566 = vrot.slane %v290, %v565
        %v569 = vsub.f32 %v494, %v562
        %v570 = vsub.f32 %v495, %v566
        %v571 = vsub.f32 %v496, %v562
        %v572 = vsub.f32 %v497, %v566
        %v573 = vsub.f32 %v498, %v562
        %v574 = vsub.f32 %v499, %v566
        %v575 = vsub.f32 %v500, %v562
        %v576 = vsub.f32 %v501, %v566
        %v577 = vsub.f32 %v502, %v562
        %v578 = vsub.f32 %v503, %v566
        %v579 = vsub.f32 %v504, %v562
        %v580 = vsub.f32 %v505, %v566
        %v581 = vsub.f32 %v506, %v562
        %v582 = vsub.f32 %v507, %v566
        %v583 = vsub.f32 %v508, %v562
        %v584 = vsub.f32 %v509, %v566
        %v585 = vsub.f32 %v510, %v562
        %v586 = vsub.f32 %v511, %v566
        %v587 = vsub.f32 %v512, %v562
        %v588 = vsub.f32 %v513, %v566
        %v589 = vsub.f32 %v514, %v562
        %v590 = vsub.f32 %v515, %v566
        %v591 = vsub.f32 %v516, %v562
        %v592 = vsub.f32 %v517, %v566
        %v593 = vsub.f32 %v518, %v562
        %v594 = vsub.f32 %v519, %v566
        %v595 = vsub.f32 %v520, %v562
        %v596 = vsub.f32 %v521, %v566
        %v597 = vsub.f32 %v522, %v562
        %v598 = vsub.f32 %v523, %v566
        %v599 = vsub.f32 %v524, %v562
        %v600 = vsub.f32 %v525, %v566
        %v601 = vsub.f32 %v526, %v562
        %v602 = vsub.f32 %v527, %v566
        %v603 = vsub.f32 %v528, %v562
        %v604 = vsub.f32 %v529, %v566
        %v605 = vsub.f32 %v530, %v562
        %v606 = vsub.f32 %v531, %v566
        %v607 = vsub.f32 %v532, %v562
        %v608 = vsub.f32 %v533, %v566
        %v609 = vsub.f32 %v534, %v562
        %v610 = vsub.f32 %v535, %v566
        %v611 = vsub.f32 %v536, %v562
        %v612 = vsub.f32 %v537, %v566
        %v613 = vsub.f32 %v538, %v562
        %v614 = vsub.f32 %v539, %v566
        %v615 = vsub.f32 %v540, %v562
        %v616 = vsub.f32 %v541, %v566
        %v617 = vsub.f32 %v542, %v562
        %v618 = vsub.f32 %v543, %v566
        %v619 = vsub.f32 %v544, %v562
        %v620 = vsub.f32 %v545, %v566
        %v621 = vsub.f32 %v546, %v562
        %v622 = vsub.f32 %v547, %v566
        %v623 = vsub.f32 %v548, %v562
        %v624 = vsub.f32 %v549, %v566
        %v625 = vsub.f32 %v550, %v562
        %v626 = vsub.f32 %v551, %v566
        %v627 = vsub.f32 %v552, %v562
        %v628 = vsub.f32 %v553, %v566
        %v629 = vsub.f32 %v554, %v562
        %v630 = vsub.f32 %v555, %v566
        %v631 = vsub.f32 %v556, %v562
        %v632 = vsub.f32 %v557, %v566
        %v633 = vmul.f32 %v569, 1.442695
        %v634 = vpow.pop %v633
        %v635 = vmul.f32 %v570, 1.442695
        %v636 = vpow.pop %v635
        %v637 = vmul.f32 %v571, 1.442695
        %v638 = vpow.pop %v637
        %v639 = vmul.f32 %v572, 1.442695
        %v640 = vpow.pop %v639
        %v641 = vmul.f32 %v573, 1.442695
        %v642 = vpow.pop %v641
        %v643 = vmul.f32 %v574, 1.442695
        %v644 = vpow.pop %v643
        %v645 = vmul.f32 %v575, 1.442695
        %v646 = vpow.pop %v645
        %v647 = vmul.f32 %v576, 1.442695
        %v648 = vpow.pop %v647
        %v649 = vmul.f32 %v577, 1.442695
        %v650 = vpow.pop %v649
        %v651 = vmul.f32 %v578, 1.442695
        %v652 = vpow.pop %v651
        %v653 = vmul.f32 %v579, 1.442695
        %v654 = vpow.pop %v653
        %v655 = vmul.f32 %v580, 1.442695
        %v656 = vpow.pop %v655
        %v657 = vmul.f32 %v581, 1.442695
        %v658 = vpow.pop %v657
        %v659 = vmul.f32 %v582, 1.442695
        %v660 = vpow.pop %v659
        %v661 = vmul.f32 %v583, 1.442695
        %v662 = vpow.pop %v661
        %v663 = vmul.f32 %v584, 1.442695
        %v664 = vpow.pop %v663
        %v665 = vmul.f32 %v585, 1.442695
        %v666 = vpow.pop %v665
        %v667 = vmul.f32 %v586, 1.442695
        %v668 = vpow.pop %v667
        %v669 = vmul.f32 %v587, 1.442695
        %v670 = vpow.pop %v669
        %v671 = vmul.f32 %v588, 1.442695
        %v672 = vpow.pop %v671
        %v673 = vmul.f32 %v589, 1.442695
        %v674 = vpow.pop %v673
        %v675 = vmul.f32 %v590, 1.442695
        %v676 = vpow.pop %v675
        %v677 = vmul.f32 %v591, 1.442695
        %v678 = vpow.pop %v677
        %v679 = vmul.f32 %v592, 1.442695
        %v680 = vpow.pop %v679
        %v681 = vmul.f32 %v593, 1.442695
        %v682 = vpow.pop %v681
        %v683 = vmul.f32 %v594, 1.442695
        %v684 = vpow.pop %v683
        %v685 = vmul.f32 %v595, 1.442695
        %v686 = vpow.pop %v685
        %v687 = vmul.f32 %v596, 1.442695
        %v688 = vpow.pop %v687
        %v689 = vmul.f32 %v597, 1.442695
        %v690 = vpow.pop %v689
        %v691 = vmul.f32 %v598, 1.442695
        %v692 = vpow.pop %v691
        %v693 = vmul.f32 %v599, 1.442695
        %v694 = vpow.pop %v693
        %v695 = vmul.f32 %v600, 1.442695
        %v696 = vpow.pop %v695
        %v697 = vmul.f32 %v601, 1.442695
        %v698 = vpow.pop %v697
        %v699 = vmul.f32 %v602, 1.442695
        %v700 = vpow.pop %v699
        %v701 = vmul.f32 %v603, 1.442695
        %v702 = vpow.pop %v701
        %v703 = vmul.f32 %v604, 1.442695
        %v704 = vpow.pop %v703
        %v705 = vmul.f32 %v605, 1.442695
        %v706 = vpow.pop %v705
        %v707 = vmul.f32 %v606, 1.442695
        %v708 = vpow.pop %v707
        %v709 = vmul.f32 %v607, 1.442695
        %v710 = vpow.pop %v709
        %v711 = vmul.f32 %v608, 1.442695
        %v712 = vpow.pop %v711
        %v713 = vmul.f32 %v609, 1.442695
        %v714 = vpow.pop %v713
        %v715 = vmul.f32 %v610, 1.442695
        %v716 = vpow.pop %v715
        %v717 = vmul.f32 %v611, 1.442695
        %v718 = vpow.pop %v717
        %v719 = vmul.f32 %v612, 1.442695
        %v720 = vpow.pop %v719
        %v721 = vmul.f32 %v613, 1.442695
        %v722 = vpow.pop %v721
        %v723 = vmul.f32 %v614, 1.442695
        %v724 = vpow.pop %v723
        %v725 = vmul.f32 %v615, 1.442695
        %v726 = vpow.pop %v725
        %v727 = vmul.f32 %v616, 1.442695
        %v728 = vpow.pop %v727
        %v729 = vmul.f32 %v617, 1.442695
        %v730 = vpow.pop %v729
        %v731 = vmul.f32 %v618, 1.442695
        %v732 = vpow.pop %v731
        %v733 = vmul.f32 %v619, 1.442695
        %v734 = vpow.pop %v733
        %v735 = vmul.f32 %v620, 1.442695
        %v736 = vpow.pop %v735
        %v737 = vmul.f32 %v621, 1.442695
        %v738 = vpow.pop %v737
        %v739 = vmul.f32 %v622, 1.442695
        %v740 = vpow.pop %v739
        %v741 = vmul.f32 %v623, 1.442695
        %v742 = vpow.pop %v741
        %v743 = vmul.f32 %v624, 1.442695
        %v744 = vpow.pop %v743
        %v745 = vmul.f32 %v625, 1.442695
        %v746 = vpow.pop %v745
        %v747 = vmul.f32 %v626, 1.442695
        %v748 = vpow.pop %v747
        %v749 = vmul.f32 %v627, 1.442695
        %v750 = vpow.pop %v749
        %v751 = vmul.f32 %v628, 1.442695
        %v752 = vpow.pop %v751
        %v753 = vmul.f32 %v629, 1.442695
        %v754 = vpow.pop %v753
        %v755 = vmul.f32 %v630, 1.442695
        %v756 = vpow.pop %v755
        %v757 = vmul.f32 %v631, 1.442695
        %v758 = vpow.pop %v757
        %v759 = vmul.f32 %v632, 1.442695
        %v760 = vpow.pop %v759
        %v761 = vld [vmem:[%s263] sm:$0x3]
        %v763 = vlaneseq
        %v764 = vshrl.u32 %v763, 7
        %v765 = vsub.s32 0, %v764
        %v766 = vrot.slane %v761, %v765
        %v767 = vlaneseq
        %v768 = vshrl.u32 %v767, 7
        %v769 = vsub.s32 1, %v768
        %v770 = vrot.slane %v761, %v769
        %v773 = vsel %vm280, %v766, 1.0
        %v774 = vsel %vm280, %v770, 1.0
        %775 = vmatprep.subr.mxu0 %v696
        %776 = vmatpush1.msra.mxu0 %v694
        %777 = vmatprep.subr.mxu0 %v692
        %778 = vmatpush1.msra.mxu0 %v690
        %779 = vmatprep.subr.mxu0 %v688
        %780 = vmatpush1.msra.mxu0 %v686
        %781 = vmatprep.subr.mxu0 %v684
        %782 = vmatpush1.msra.mxu0 %v682
        %783 = vmatprep.subr.mxu0 %v680
        %784 = vmatpush1.msra.mxu0 %v678
        %785 = vmatprep.subr.mxu0 %v676
        %786 = vmatpush1.msra.mxu0 %v674
        %787 = vmatprep.subr.mxu0 %v672
        %788 = vmatpush1.msra.mxu0 %v670
        %789 = vmatprep.subr.mxu0 %v668
        %790 = vmatpush1.msra.mxu0 %v666
        %791 = vmatprep.subr.mxu0 %v664
        %792 = vmatpush1.msra.mxu0 %v662
        %793 = vmatprep.subr.mxu0 %v660
        %794 = vmatpush1.msra.mxu0 %v658
        %795 = vmatprep.subr.mxu0 %v656
        %796 = vmatpush1.msra.mxu0 %v654
        %797 = vmatprep.subr.mxu0 %v652
        %798 = vmatpush1.msra.mxu0 %v650
        %799 = vmatprep.subr.mxu0 %v648
        %800 = vmatpush1.msra.mxu0 %v646
        %801 = vmatprep.subr.mxu0 %v644
        %802 = vmatpush1.msra.mxu0 %v642
        %803 = vmatprep.subr.mxu0 %v640
        %804 = vmatpush1.msra.mxu0 %v638
        %805 = vmatprep.subr.mxu0 %v636
        %806 = vmatpush1.msra.mxu0 %v634
        %807 = vmatprep.subr.mxu0 %v760
        %808 = vmatpush2.msra.mxu0 %v758
        %809 = vmatprep.subr.mxu0 %v756
        %810 = vmatpush2.msra.mxu0 %v754
        %811 = vmatprep.subr.mxu0 %v752
        %812 = vmatpush2.msra.mxu0 %v750
        %813 = vmatprep.subr.mxu0 %v748
        %814 = vmatpush2.msra.mxu0 %v746
        %815 = vmatprep.subr.mxu0 %v744
        %816 = vmatpush2.msra.mxu0 %v742
        %817 = vmatprep.subr.mxu0 %v740
        %818 = vmatpush2.msra.mxu0 %v738
        %819 = vmatprep.subr.mxu0 %v736
        %820 = vmatpush2.msra.mxu0 %v734
        %821 = vmatprep.subr.mxu0 %v732
        %822 = vmatpush2.msra.mxu0 %v730
        %823 = vmatprep.subr.mxu0 %v728
        %824 = vmatpush2.msra.mxu0 %v726
        %825 = vmatprep.subr.mxu0 %v724
        %826 = vmatpush2.msra.mxu0 %v722
        %827 = vmatprep.subr.mxu0 %v720
        %828 = vmatpush2.msra.mxu0 %v718
        %829 = vmatprep.subr.mxu0 %v716
        %830 = vmatpush2.msra.mxu0 %v714
        %831 = vmatprep.subr.mxu0 %v712
        %832 = vmatpush2.msra.mxu0 %v710
        %833 = vmatprep.subr.mxu0 %v708
        %834 = vmatpush2.msra.mxu0 %v706
        %835 = vmatprep.subr.mxu0 %v704
        %836 = vmatpush2.msra.mxu0 %v702
        %837 = vmatprep.subr.mxu0 %v700
        %838 = vmatpush2.msra.mxu0 %v698
        %839 = vmatprep.mubr.f32.mxu0 %v774
        %840 = vmatmul.mubr.f32.gmra.mxu0 %v773
        %v841 = vpop.f32.mrf.mxu0
        %v842 = vadd.f32 0.0, %v841
        %v843 = vpop.f32.mrf.mxu0
        %v844 = vadd.f32 0.0, %v843
        %845 = vdwg.mxu0
        %v846 = vrcp.pop %v842
        %v847 = vrcp.pop %v844
        %v848 = vmul.f32 %v842, %v846
        %v849 = vmul.f32 %v844, %v847
        %v850 = vsub.f32 2.0, %v848
        %v851 = vsub.f32 2.0, %v849
        %v852 = vmul.f32 %v846, %v850
        %v853 = vmul.f32 %v847, %v851
        %v854 = vstv %s273
        %v855 = vmul.f32 %v854, %v842
        %v856 = vmul.f32 %v854, %v844
        %v859 = vrot.slane %v852, 1
        %v860 = vrot.slane %v853, 1
        %v863 = vmul.f32 %v855, %v859
        %v864 = vmul.f32 %v856, %v860
        %v865 = vadd.f32 %v863, %v487
        %v866 = vadd.f32 %v864, %v491
        %v869 = vcombine.low %v865, %v866
        %v871 = vunpack.c.l.s4 1966171168
        %v872 = vunpack.c.0.s8 %v871
        %v873 = vlaneseq
        %v874 = vshrl.u32 %v873, 7
        %v875 = vsub.s32 %v872, %v874
        %v876 = vrot.slane %v869, %v875
        %v878 = vunpack.c.l.s4 1966171168
        %v879 = vunpack.c.0.s8 %v878
        %v880 = vlaneseq
        %v881 = vshrl.u32 %v880, 7
        %v882 = vsub.s32 %v879, %v881
        %v883 = vrot.slane %v876, %v882
        %v885 = vlaneseq
        %vm886 = vcmp.ge.s32.totalorder %v885, 0
        %vm887 = vcmp.lt.s32.totalorder %v885, 256
        %vm888 = vmand %vm886, %vm887
        %889 = vst.msk [vmem:[%s254] sm:$0x3] %vm888, %v883
        %s890 = sadd.s32 %s281, 2
        %s891 = scalar_lea.vmem %s263, %s890
        %v892 = vld [vmem:[%s891] sm:$0x3]
        %vm893 = vcmp.ge.f32.partialorder %v892, 0.0
        %v894 = vmul.f32 %v892, %v286
        %v895 = vmul.f32 %v892, %v288
        %v896 = vsel %vm893, %v894, %v895
        %v897 = vld [vmem:[%s269] sm:$0xff]
        %v898 = vld [vmem:[%s269 + $0x8] sm:$0xff]
        %v899 = vld [vmem:[%s269 + $0x10] sm:$0xff]
        %v900 = vld [vmem:[%s269 + $0x18] sm:$0xff]
        %v901 = vld [vmem:[%s269 + $0x20] sm:$0xff]
        %v902 = vld [vmem:[%s269 + $0x28] sm:$0xff]
        %v903 = vld [vmem:[%s269 + $0x30] sm:$0xff]
        %v904 = vld [vmem:[%s269 + $0x38] sm:$0xff]
        %v905 = vld [vmem:[%s269 + $0x40] sm:$0xff]
        %v906 = vld [vmem:[%s269 + $0x48] sm:$0xff]
        %v907 = vld [vmem:[%s269 + $0x50] sm:$0xff]
        %v908 = vld [vmem:[%s269 + $0x58] sm:$0xff]
        %v909 = vld [vmem:[%s269 + $0x60] sm:$0xff]
        %v910 = vld [vmem:[%s269 + $0x68] sm:$0xff]
        %v911 = vld [vmem:[%s269 + $0x70] sm:$0xff]
        %v912 = vld [vmem:[%s269 + $0x78] sm:$0xff]
        %v913 = vld [vmem:[%s269 + $0x80] sm:$0xff]
        %v914 = vld [vmem:[%s269 + $0x88] sm:$0xff]
        %v915 = vld [vmem:[%s269 + $0x90] sm:$0xff]
        %v916 = vld [vmem:[%s269 + $0x98] sm:$0xff]
        %v917 = vld [vmem:[%s269 + $0xa0] sm:$0xff]
        %v918 = vld [vmem:[%s269 + $0xa8] sm:$0xff]
        %v919 = vld [vmem:[%s269 + $0xb0] sm:$0xff]
        %v920 = vld [vmem:[%s269 + $0xb8] sm:$0xff]
        %v921 = vld [vmem:[%s269 + $0xc0] sm:$0xff]
        %v922 = vld [vmem:[%s269 + $0xc8] sm:$0xff]
        %v923 = vld [vmem:[%s269 + $0xd0] sm:$0xff]
        %v924 = vld [vmem:[%s269 + $0xd8] sm:$0xff]
        %v925 = vld [vmem:[%s269 + $0xe0] sm:$0xff]
        %v926 = vld [vmem:[%s269 + $0xe8] sm:$0xff]
        %v927 = vld [vmem:[%s269 + $0xf0] sm:$0xff]
        %v928 = vld [vmem:[%s269 + $0xf8] sm:$0xff]
        %930 = vset.pattern.permute.xlu0 0
        %931 = vperm.xlu0 %930, %v897
        %v932 = vpop.permute.xlu0 %931
        %935 = vset.pattern.permute.xlu0 0
        %936 = vperm.xlu0 %935, %v898
        %v937 = vpop.permute.xlu0 %936
        %940 = vset.pattern.permute.xlu0 0
        %941 = vperm.xlu0 %940, %v899
        %v942 = vpop.permute.xlu0 %941
        %945 = vset.pattern.permute.xlu0 0
        %946 = vperm.xlu0 %945, %v900
        %v947 = vpop.permute.xlu0 %946
        %950 = vset.pattern.permute.xlu0 0
        %951 = vperm.xlu0 %950, %v901
        %v952 = vpop.permute.xlu0 %951
        %955 = vset.pattern.permute.xlu0 0
        %956 = vperm.xlu0 %955, %v902
        %v957 = vpop.permute.xlu0 %956
        %960 = vset.pattern.permute.xlu0 0
        %961 = vperm.xlu0 %960, %v903
        %v962 = vpop.permute.xlu0 %961
        %965 = vset.pattern.permute.xlu0 0
        %966 = vperm.xlu0 %965, %v904
        %v967 = vpop.permute.xlu0 %966
        %970 = vset.pattern.permute.xlu0 0
        %971 = vperm.xlu0 %970, %v905
        %v972 = vpop.permute.xlu0 %971
        %975 = vset.pattern.permute.xlu0 0
        %976 = vperm.xlu0 %975, %v906
        %v977 = vpop.permute.xlu0 %976
        %980 = vset.pattern.permute.xlu0 0
        %981 = vperm.xlu0 %980, %v907
        %v982 = vpop.permute.xlu0 %981
        %985 = vset.pattern.permute.xlu0 0
        %986 = vperm.xlu0 %985, %v908
        %v987 = vpop.permute.xlu0 %986
        %990 = vset.pattern.permute.xlu0 0
        %991 = vperm.xlu0 %990, %v909
        %v992 = vpop.permute.xlu0 %991
        %995 = vset.pattern.permute.xlu0 0
        %996 = vperm.xlu0 %995, %v910
        %v997 = vpop.permute.xlu0 %996
        %1000 = vset.pattern.permute.xlu0 0
        %1001 = vperm.xlu0 %1000, %v911
        %v1002 = vpop.permute.xlu0 %1001
        %1005 = vset.pattern.permute.xlu0 0
        %1006 = vperm.xlu0 %1005, %v912
        %v1007 = vpop.permute.xlu0 %1006
        %1010 = vset.pattern.permute.xlu0 0
        %1011 = vperm.xlu0 %1010, %v913
        %v1012 = vpop.permute.xlu0 %1011
        %1015 = vset.pattern.permute.xlu0 0
        %1016 = vperm.xlu0 %1015, %v914
        %v1017 = vpop.permute.xlu0 %1016
        %1020 = vset.pattern.permute.xlu0 0
        %1021 = vperm.xlu0 %1020, %v915
        %v1022 = vpop.permute.xlu0 %1021
        %1025 = vset.pattern.permute.xlu0 0
        %1026 = vperm.xlu0 %1025, %v916
        %v1027 = vpop.permute.xlu0 %1026
        %1030 = vset.pattern.permute.xlu0 0
        %1031 = vperm.xlu0 %1030, %v917
        %v1032 = vpop.permute.xlu0 %1031
        %1035 = vset.pattern.permute.xlu0 0
        %1036 = vperm.xlu0 %1035, %v918
        %v1037 = vpop.permute.xlu0 %1036
        %1040 = vset.pattern.permute.xlu0 0
        %1041 = vperm.xlu0 %1040, %v919
        %v1042 = vpop.permute.xlu0 %1041
        %1045 = vset.pattern.permute.xlu0 0
        %1046 = vperm.xlu0 %1045, %v920
        %v1047 = vpop.permute.xlu0 %1046
        %1050 = vset.pattern.permute.xlu0 0
        %1051 = vperm.xlu0 %1050, %v921
        %v1052 = vpop.permute.xlu0 %1051
        %1055 = vset.pattern.permute.xlu0 0
        %1056 = vperm.xlu0 %1055, %v922
        %v1057 = vpop.permute.xlu0 %1056
        %1060 = vset.pattern.permute.xlu0 0
        %1061 = vperm.xlu0 %1060, %v923
        %v1062 = vpop.permute.xlu0 %1061
        %1065 = vset.pattern.permute.xlu0 0
        %1066 = vperm.xlu0 %1065, %v924
        %v1067 = vpop.permute.xlu0 %1066
        %1070 = vset.pattern.permute.xlu0 0
        %1071 = vperm.xlu0 %1070, %v925
        %v1072 = vpop.permute.xlu0 %1071
        %1075 = vset.pattern.permute.xlu0 0
        %1076 = vperm.xlu0 %1075, %v926
        %v1077 = vpop.permute.xlu0 %1076
        %1080 = vset.pattern.permute.xlu0 0
        %1081 = vperm.xlu0 %1080, %v927
        %v1082 = vpop.permute.xlu0 %1081
        %1085 = vset.pattern.permute.xlu0 0
        %1086 = vperm.xlu0 %1085, %v928
        %v1087 = vpop.permute.xlu0 %1086
        %v1090 = vlaneseq
        %v1091 = vshrl.u32 %v1090, 7
        %v1092 = vsub.s32 0, %v1091
        %v1093 = vrot.slane %v892, %v1092
        %v1094 = vlaneseq
        %v1095 = vshrl.u32 %v1094, 7
        %v1096 = vsub.s32 1, %v1095
        %v1097 = vrot.slane %v892, %v1096
        %v1100 = vmul.f32 %v932, %v1093
        %v1101 = vmul.f32 %v932, %v1097
        %v1102 = vmul.f32 %v937, %v1093
        %v1103 = vmul.f32 %v937, %v1097
        %v1104 = vmul.f32 %v942, %v1093
        %v1105 = vmul.f32 %v942, %v1097
        %v1106 = vmul.f32 %v947, %v1093
        %v1107 = vmul.f32 %v947, %v1097
        %v1108 = vmul.f32 %v952, %v1093
        %v1109 = vmul.f32 %v952, %v1097
        %v1110 = vmul.f32 %v957, %v1093
        %v1111 = vmul.f32 %v957, %v1097
        %v1112 = vmul.f32 %v962, %v1093
        %v1113 = vmul.f32 %v962, %v1097
        %v1114 = vmul.f32 %v967, %v1093
        %v1115 = vmul.f32 %v967, %v1097
        %v1116 = vmul.f32 %v972, %v1093
        %v1117 = vmul.f32 %v972, %v1097
        %v1118 = vmul.f32 %v977, %v1093
        %v1119 = vmul.f32 %v977, %v1097
        %v1120 = vmul.f32 %v982, %v1093
        %v1121 = vmul.f32 %v982, %v1097
        %v1122 = vmul.f32 %v987, %v1093
        %v1123 = vmul.f32 %v987, %v1097
        %v1124 = vmul.f32 %v992, %v1093
        %v1125 = vmul.f32 %v992, %v1097
        %v1126 = vmul.f32 %v997, %v1093
        %v1127 = vmul.f32 %v997, %v1097
        %v1128 = vmul.f32 %v1002, %v1093
        %v1129 = vmul.f32 %v1002, %v1097
        %v1130 = vmul.f32 %v1007, %v1093
        %v1131 = vmul.f32 %v1007, %v1097
        %v1132 = vmul.f32 %v1012, %v1093
        %v1133 = vmul.f32 %v1012, %v1097
        %v1134 = vmul.f32 %v1017, %v1093
        %v1135 = vmul.f32 %v1017, %v1097
        %v1136 = vmul.f32 %v1022, %v1093
        %v1137 = vmul.f32 %v1022, %v1097
        %v1138 = vmul.f32 %v1027, %v1093
        %v1139 = vmul.f32 %v1027, %v1097
        %v1140 = vmul.f32 %v1032, %v1093
        %v1141 = vmul.f32 %v1032, %v1097
        %v1142 = vmul.f32 %v1037, %v1093
        %v1143 = vmul.f32 %v1037, %v1097
        %v1144 = vmul.f32 %v1042, %v1093
        %v1145 = vmul.f32 %v1042, %v1097
        %v1146 = vmul.f32 %v1047, %v1093
        %v1147 = vmul.f32 %v1047, %v1097
        %v1148 = vmul.f32 %v1052, %v1093
        %v1149 = vmul.f32 %v1052, %v1097
        %v1150 = vmul.f32 %v1057, %v1093
        %v1151 = vmul.f32 %v1057, %v1097
        %v1152 = vmul.f32 %v1062, %v1093
        %v1153 = vmul.f32 %v1062, %v1097
        %v1154 = vmul.f32 %v1067, %v1093
        %v1155 = vmul.f32 %v1067, %v1097
        %v1156 = vmul.f32 %v1072, %v1093
        %v1157 = vmul.f32 %v1072, %v1097
        %v1158 = vmul.f32 %v1077, %v1093
        %v1159 = vmul.f32 %v1077, %v1097
        %v1160 = vmul.f32 %v1082, %v1093
        %v1161 = vmul.f32 %v1082, %v1097
        %v1162 = vmul.f32 %v1087, %v1093
        %v1163 = vmul.f32 %v1087, %v1097
        %v1165 = vlaneseq
        %v1166 = vshrl.u32 %v1165, 7
        %v1167 = vsub.s32 0, %v1166
        %v1168 = vrot.slane %v896, %v1167
        %v1169 = vlaneseq
        %v1170 = vshrl.u32 %v1169, 7
        %v1171 = vsub.s32 1, %v1170
        %v1172 = vrot.slane %v896, %v1171
        %v1175 = vsub.f32 %v1100, %v1168
        %v1176 = vsub.f32 %v1101, %v1172
        %v1177 = vsub.f32 %v1102, %v1168
        %v1178 = vsub.f32 %v1103, %v1172
        %v1179 = vsub.f32 %v1104, %v1168
        %v1180 = vsub.f32 %v1105, %v1172
        %v1181 = vsub.f32 %v1106, %v1168
        %v1182 = vsub.f32 %v1107, %v1172
        %v1183 = vsub.f32 %v1108, %v1168
        %v1184 = vsub.f32 %v1109, %v1172
        %v1185 = vsub.f32 %v1110, %v1168
        %v1186 = vsub.f32 %v1111, %v1172
        %v1187 = vsub.f32 %v1112, %v1168
        %v1188 = vsub.f32 %v1113, %v1172
        %v1189 = vsub.f32 %v1114, %v1168
        %v1190 = vsub.f32 %v1115, %v1172
        %v1191 = vsub.f32 %v1116, %v1168
        %v1192 = vsub.f32 %v1117, %v1172
        %v1193 = vsub.f32 %v1118, %v1168
        %v1194 = vsub.f32 %v1119, %v1172
        %v1195 = vsub.f32 %v1120, %v1168
        %v1196 = vsub.f32 %v1121, %v1172
        %v1197 = vsub.f32 %v1122, %v1168
        %v1198 = vsub.f32 %v1123, %v1172
        %v1199 = vsub.f32 %v1124, %v1168
        %v1200 = vsub.f32 %v1125, %v1172
        %v1201 = vsub.f32 %v1126, %v1168
        %v1202 = vsub.f32 %v1127, %v1172
        %v1203 = vsub.f32 %v1128, %v1168
        %v1204 = vsub.f32 %v1129, %v1172
        %v1205 = vsub.f32 %v1130, %v1168
        %v1206 = vsub.f32 %v1131, %v1172
        %v1207 = vsub.f32 %v1132, %v1168
        %v1208 = vsub.f32 %v1133, %v1172
        %v1209 = vsub.f32 %v1134, %v1168
        %v1210 = vsub.f32 %v1135, %v1172
        %v1211 = vsub.f32 %v1136, %v1168
        %v1212 = vsub.f32 %v1137, %v1172
        %v1213 = vsub.f32 %v1138, %v1168
        %v1214 = vsub.f32 %v1139, %v1172
        %v1215 = vsub.f32 %v1140, %v1168
        %v1216 = vsub.f32 %v1141, %v1172
        %v1217 = vsub.f32 %v1142, %v1168
        %v1218 = vsub.f32 %v1143, %v1172
        %v1219 = vsub.f32 %v1144, %v1168
        %v1220 = vsub.f32 %v1145, %v1172
        %v1221 = vsub.f32 %v1146, %v1168
        %v1222 = vsub.f32 %v1147, %v1172
        %v1223 = vsub.f32 %v1148, %v1168
        %v1224 = vsub.f32 %v1149, %v1172
        %v1225 = vsub.f32 %v1150, %v1168
        %v1226 = vsub.f32 %v1151, %v1172
        %v1227 = vsub.f32 %v1152, %v1168
        %v1228 = vsub.f32 %v1153, %v1172
        %v1229 = vsub.f32 %v1154, %v1168
        %v1230 = vsub.f32 %v1155, %v1172
        %v1231 = vsub.f32 %v1156, %v1168
        %v1232 = vsub.f32 %v1157, %v1172
        %v1233 = vsub.f32 %v1158, %v1168
        %v1234 = vsub.f32 %v1159, %v1172
        %v1235 = vsub.f32 %v1160, %v1168
        %v1236 = vsub.f32 %v1161, %v1172
        %v1237 = vsub.f32 %v1162, %v1168
        %v1238 = vsub.f32 %v1163, %v1172
        %v1239 = vmul.f32 %v1175, 1.442695
        %v1240 = vpow.pop %v1239
        %v1241 = vmul.f32 %v1176, 1.442695
        %v1242 = vpow.pop %v1241
        %v1243 = vmul.f32 %v1177, 1.442695
        %v1244 = vpow.pop %v1243
        %v1245 = vmul.f32 %v1178, 1.442695
        %v1246 = vpow.pop %v1245
        %v1247 = vmul.f32 %v1179, 1.442695
        %v1248 = vpow.pop %v1247
        %v1249 = vmul.f32 %v1180, 1.442695
        %v1250 = vpow.pop %v1249
        %v1251 = vmul.f32 %v1181, 1.442695
        %v1252 = vpow.pop %v1251
        %v1253 = vmul.f32 %v1182, 1.442695
        %v1254 = vpow.pop %v1253
        %v1255 = vmul.f32 %v1183, 1.442695
        %v1256 = vpow.pop %v1255
        %v1257 = vmul.f32 %v1184, 1.442695
        %v1258 = vpow.pop %v1257
        %v1259 = vmul.f32 %v1185, 1.442695
        %v1260 = vpow.pop %v1259
        %v1261 = vmul.f32 %v1186, 1.442695
        %v1262 = vpow.pop %v1261
        %v1263 = vmul.f32 %v1187, 1.442695
        %v1264 = vpow.pop %v1263
        %v1265 = vmul.f32 %v1188, 1.442695
        %v1266 = vpow.pop %v1265
        %v1267 = vmul.f32 %v1189, 1.442695
        %v1268 = vpow.pop %v1267
        %v1269 = vmul.f32 %v1190, 1.442695
        %v1270 = vpow.pop %v1269
        %v1271 = vmul.f32 %v1191, 1.442695
        %v1272 = vpow.pop %v1271
        %v1273 = vmul.f32 %v1192, 1.442695
        %v1274 = vpow.pop %v1273
        %v1275 = vmul.f32 %v1193, 1.442695
        %v1276 = vpow.pop %v1275
        %v1277 = vmul.f32 %v1194, 1.442695
        %v1278 = vpow.pop %v1277
        %v1279 = vmul.f32 %v1195, 1.442695
        %v1280 = vpow.pop %v1279
        %v1281 = vmul.f32 %v1196, 1.442695
        %v1282 = vpow.pop %v1281
        %v1283 = vmul.f32 %v1197, 1.442695
        %v1284 = vpow.pop %v1283
        %v1285 = vmul.f32 %v1198, 1.442695
        %v1286 = vpow.pop %v1285
        %v1287 = vmul.f32 %v1199, 1.442695
        %v1288 = vpow.pop %v1287
        %v1289 = vmul.f32 %v1200, 1.442695
        %v1290 = vpow.pop %v1289
        %v1291 = vmul.f32 %v1201, 1.442695
        %v1292 = vpow.pop %v1291
        %v1293 = vmul.f32 %v1202, 1.442695
        %v1294 = vpow.pop %v1293
        %v1295 = vmul.f32 %v1203, 1.442695
        %v1296 = vpow.pop %v1295
        %v1297 = vmul.f32 %v1204, 1.442695
        %v1298 = vpow.pop %v1297
        %v1299 = vmul.f32 %v1205, 1.442695
        %v1300 = vpow.pop %v1299
        %v1301 = vmul.f32 %v1206, 1.442695
        %v1302 = vpow.pop %v1301
        %v1303 = vmul.f32 %v1207, 1.442695
        %v1304 = vpow.pop %v1303
        %v1305 = vmul.f32 %v1208, 1.442695
        %v1306 = vpow.pop %v1305
        %v1307 = vmul.f32 %v1209, 1.442695
        %v1308 = vpow.pop %v1307
        %v1309 = vmul.f32 %v1210, 1.442695
        %v1310 = vpow.pop %v1309
        %v1311 = vmul.f32 %v1211, 1.442695
        %v1312 = vpow.pop %v1311
        %v1313 = vmul.f32 %v1212, 1.442695
        %v1314 = vpow.pop %v1313
        %v1315 = vmul.f32 %v1213, 1.442695
        %v1316 = vpow.pop %v1315
        %v1317 = vmul.f32 %v1214, 1.442695
        %v1318 = vpow.pop %v1317
        %v1319 = vmul.f32 %v1215, 1.442695
        %v1320 = vpow.pop %v1319
        %v1321 = vmul.f32 %v1216, 1.442695
        %v1322 = vpow.pop %v1321
        %v1323 = vmul.f32 %v1217, 1.442695
        %v1324 = vpow.pop %v1323
        %v1325 = vmul.f32 %v1218, 1.442695
        %v1326 = vpow.pop %v1325
        %v1327 = vmul.f32 %v1219, 1.442695
        %v1328 = vpow.pop %v1327
        %v1329 = vmul.f32 %v1220, 1.442695
        %v1330 = vpow.pop %v1329
        %v1331 = vmul.f32 %v1221, 1.442695
        %v1332 = vpow.pop %v1331
        %v1333 = vmul.f32 %v1222, 1.442695
        %v1334 = vpow.pop %v1333
        %v1335 = vmul.f32 %v1223, 1.442695
        %v1336 = vpow.pop %v1335
        %v1337 = vmul.f32 %v1224, 1.442695
        %v1338 = vpow.pop %v1337
        %v1339 = vmul.f32 %v1225, 1.442695
        %v1340 = vpow.pop %v1339
        %v1341 = vmul.f32 %v1226, 1.442695
        %v1342 = vpow.pop %v1341
        %v1343 = vmul.f32 %v1227, 1.442695
        %v1344 = vpow.pop %v1343
        %v1345 = vmul.f32 %v1228, 1.442695
        %v1346 = vpow.pop %v1345
        %v1347 = vmul.f32 %v1229, 1.442695
        %v1348 = vpow.pop %v1347
        %v1349 = vmul.f32 %v1230, 1.442695
        %v1350 = vpow.pop %v1349
        %v1351 = vmul.f32 %v1231, 1.442695
        %v1352 = vpow.pop %v1351
        %v1353 = vmul.f32 %v1232, 1.442695
        %v1354 = vpow.pop %v1353
        %v1355 = vmul.f32 %v1233, 1.442695
        %v1356 = vpow.pop %v1355
        %v1357 = vmul.f32 %v1234, 1.442695
        %v1358 = vpow.pop %v1357
        %v1359 = vmul.f32 %v1235, 1.442695
        %v1360 = vpow.pop %v1359
        %v1361 = vmul.f32 %v1236, 1.442695
        %v1362 = vpow.pop %v1361
        %v1363 = vmul.f32 %v1237, 1.442695
        %v1364 = vpow.pop %v1363
        %v1365 = vmul.f32 %v1238, 1.442695
        %v1366 = vpow.pop %v1365
        %s1367 = sadd.s32 0, 2
        %s1368 = scalar_lea.vmem %s263, %s1367
        %v1369 = vld [vmem:[%s1368] sm:$0x3]
        %v1371 = vlaneseq
        %v1372 = vshrl.u32 %v1371, 7
        %v1373 = vsub.s32 0, %v1372
        %v1374 = vrot.slane %v1369, %v1373
        %v1375 = vlaneseq
        %v1376 = vshrl.u32 %v1375, 7
        %v1377 = vsub.s32 1, %v1376
        %v1378 = vrot.slane %v1369, %v1377
        %v1381 = vsel %vm280, %v1374, 1.0
        %v1382 = vsel %vm280, %v1378, 1.0
        %1383 = vmatprep.subr.mxu0 %v1302
        %1384 = vmatpush1.msra.mxu0 %v1300
        %1385 = vmatprep.subr.mxu0 %v1298
        %1386 = vmatpush1.msra.mxu0 %v1296
        %1387 = vmatprep.subr.mxu0 %v1294
        %1388 = vmatpush1.msra.mxu0 %v1292
        %1389 = vmatprep.subr.mxu0 %v1290
        %1390 = vmatpush1.msra.mxu0 %v1288
        %1391 = vmatprep.subr.mxu0 %v1286
        %1392 = vmatpush1.msra.mxu0 %v1284
        %1393 = vmatprep.subr.mxu0 %v1282
        %1394 = vmatpush1.msra.mxu0 %v1280
        %1395 = vmatprep.subr.mxu0 %v1278
        %1396 = vmatpush1.msra.mxu0 %v1276
        %1397 = vmatprep.subr.mxu0 %v1274
        %1398 = vmatpush1.msra.mxu0 %v1272
        %1399 = vmatprep.subr.mxu0 %v1270
        %1400 = vmatpush1.msra.mxu0 %v1268
        %1401 = vmatprep.subr.mxu0 %v1266
        %1402 = vmatpush1.msra.mxu0 %v1264
        %1403 = vmatprep.subr.mxu0 %v1262
        %1404 = vmatpush1.msra.mxu0 %v1260
        %1405 = vmatprep.subr.mxu0 %v1258
        %1406 = vmatpush1.msra.mxu0 %v1256
        %1407 = vmatprep.subr.mxu0 %v1254
        %1408 = vmatpush1.msra.mxu0 %v1252
        %1409 = vmatprep.subr.mxu0 %v1250
        %1410 = vmatpush1.msra.mxu0 %v1248
        %1411 = vmatprep.subr.mxu0 %v1246
        %1412 = vmatpush1.msra.mxu0 %v1244
        %1413 = vmatprep.subr.mxu0 %v1242
        %1414 = vmatpush1.msra.mxu0 %v1240
        %1415 = vmatprep.subr.mxu0 %v1366
        %1416 = vmatpush2.msra.mxu0 %v1364
        %1417 = vmatprep.subr.mxu0 %v1362
        %1418 = vmatpush2.msra.mxu0 %v1360
        %1419 = vmatprep.subr.mxu0 %v1358
        %1420 = vmatpush2.msra.mxu0 %v1356
        %1421 = vmatprep.subr.mxu0 %v1354
        %1422 = vmatpush2.msra.mxu0 %v1352
        %1423 = vmatprep.subr.mxu0 %v1350
        %1424 = vmatpush2.msra.mxu0 %v1348
        %1425 = vmatprep.subr.mxu0 %v1346
        %1426 = vmatpush2.msra.mxu0 %v1344
        %1427 = vmatprep.subr.mxu0 %v1342
        %1428 = vmatpush2.msra.mxu0 %v1340
        %1429 = vmatprep.subr.mxu0 %v1338
        %1430 = vmatpush2.msra.mxu0 %v1336
        %1431 = vmatprep.subr.mxu0 %v1334
        %1432 = vmatpush2.msra.mxu0 %v1332
        %1433 = vmatprep.subr.mxu0 %v1330
        %1434 = vmatpush2.msra.mxu0 %v1328
        %1435 = vmatprep.subr.mxu0 %v1326
        %1436 = vmatpush2.msra.mxu0 %v1324
        %1437 = vmatprep.subr.mxu0 %v1322
        %1438 = vmatpush2.msra.mxu0 %v1320
        %1439 = vmatprep.subr.mxu0 %v1318
        %1440 = vmatpush2.msra.mxu0 %v1316
        %1441 = vmatprep.subr.mxu0 %v1314
        %1442 = vmatpush2.msra.mxu0 %v1312
        %1443 = vmatprep.subr.mxu0 %v1310
        %1444 = vmatpush2.msra.mxu0 %v1308
        %1445 = vmatprep.subr.mxu0 %v1306
        %1446 = vmatpush2.msra.mxu0 %v1304
        %1447 = vmatprep.mubr.f32.mxu0 %v1382
        %1448 = vmatmul.mubr.f32.gmra.mxu0 %v1381
        %v1449 = vpop.f32.mrf.mxu0
        %v1450 = vadd.f32 0.0, %v1449
        %v1451 = vpop.f32.mrf.mxu0
        %v1452 = vadd.f32 0.0, %v1451
        %1453 = vdwg.mxu0
        %v1454 = vrcp.pop %v1450
        %v1455 = vrcp.pop %v1452
        %v1456 = vmul.f32 %v1450, %v1454
        %v1457 = vmul.f32 %v1452, %v1455
        %v1458 = vsub.f32 2.0, %v1456
        %v1459 = vsub.f32 2.0, %v1457
        %v1460 = vmul.f32 %v1454, %v1458
        %v1461 = vmul.f32 %v1455, %v1459
        %v1462 = vmul.f32 %v854, %v1450
        %v1463 = vmul.f32 %v854, %v1452
        %v1466 = vrot.slane %v1460, 1
        %v1467 = vrot.slane %v1461, 1
        %v1470 = vmul.f32 %v1462, %v1466
        %v1471 = vmul.f32 %v1463, %v1467
        %v1472 = vadd.f32 %v1470, %v1093
        %v1473 = vadd.f32 %v1471, %v1097
        %v1476 = vcombine.low %v1472, %v1473
        %v1478 = vunpack.c.l.s4 1966171168
        %v1479 = vunpack.c.0.s8 %v1478
        %v1480 = vlaneseq
        %v1481 = vshrl.u32 %v1480, 7
        %v1482 = vsub.s32 %v1479, %v1481
        %v1483 = vrot.slane %v1476, %v1482
        %v1485 = vunpack.c.l.s4 1966171168
        %v1486 = vunpack.c.0.s8 %v1485
        %v1487 = vlaneseq
        %v1488 = vshrl.u32 %v1487, 7
        %v1489 = vsub.s32 %v1486, %v1488
        %v1490 = vrot.slane %v1483, %v1489
        %s1492 = scalar_lea.vmem %s254, 2 [#allocation6]
        %1493 = vst.msk [vmem:[%s1492] sm:$0x3] %vm888, %v1490
        %s1494 = sadd.s32 %s281, 4
        %s1495 = scalar_lea.vmem %s263, %s1494
        %v1496 = vld [vmem:[%s1495] sm:$0x3]
        %vm1497 = vcmp.ge.f32.partialorder %v1496, 0.0
        %v1498 = vmul.f32 %v1496, %v286
        %v1499 = vmul.f32 %v1496, %v288
        %v1500 = vsel %vm1497, %v1498, %v1499
        %v1501 = vld [vmem:[%s269] sm:$0xff]
        %v1502 = vld [vmem:[%s269 + $0x8] sm:$0xff]
        %v1503 = vld [vmem:[%s269 + $0x10] sm:$0xff]
        %v1504 = vld [vmem:[%s269 + $0x18] sm:$0xff]
        %v1505 = vld [vmem:[%s269 + $0x20] sm:$0xff]
        %v1506 = vld [vmem:[%s269 + $0x28] sm:$0xff]
        %v1507 = vld [vmem:[%s269 + $0x30] sm:$0xff]
        %v1508 = vld [vmem:[%s269 + $0x38] sm:$0xff]
        %v1509 = vld [vmem:[%s269 + $0x40] sm:$0xff]
        %v1510 = vld [vmem:[%s269 + $0x48] sm:$0xff]
        %v1511 = vld [vmem:[%s269 + $0x50] sm:$0xff]
        %v1512 = vld [vmem:[%s269 + $0x58] sm:$0xff]
        %v1513 = vld [vmem:[%s269 + $0x60] sm:$0xff]
        %v1514 = vld [vmem:[%s269 + $0x68] sm:$0xff]
        %v1515 = vld [vmem:[%s269 + $0x70] sm:$0xff]
        %v1516 = vld [vmem:[%s269 + $0x78] sm:$0xff]
        %v1517 = vld [vmem:[%s269 + $0x80] sm:$0xff]
        %v1518 = vld [vmem:[%s269 + $0x88] sm:$0xff]
        %v1519 = vld [vmem:[%s269 + $0x90] sm:$0xff]
        %v1520 = vld [vmem:[%s269 + $0x98] sm:$0xff]
        %v1521 = vld [vmem:[%s269 + $0xa0] sm:$0xff]
        %v1522 = vld [vmem:[%s269 + $0xa8] sm:$0xff]
        %v1523 = vld [vmem:[%s269 + $0xb0] sm:$0xff]
        %v1524 = vld [vmem:[%s269 + $0xb8] sm:$0xff]
        %v1525 = vld [vmem:[%s269 + $0xc0] sm:$0xff]
        %v1526 = vld [vmem:[%s269 + $0xc8] sm:$0xff]
        %v1527 = vld [vmem:[%s269 + $0xd0] sm:$0xff]
        %v1528 = vld [vmem:[%s269 + $0xd8] sm:$0xff]
        %v1529 = vld [vmem:[%s269 + $0xe0] sm:$0xff]
        %v1530 = vld [vmem:[%s269 + $0xe8] sm:$0xff]
        %v1531 = vld [vmem:[%s269 + $0xf0] sm:$0xff]
        %v1532 = vld [vmem:[%s269 + $0xf8] sm:$0xff]
        %1534 = vset.pattern.permute.xlu0 0
        %1535 = vperm.xlu0 %1534, %v1501
        %v1536 = vpop.permute.xlu0 %1535
        %1539 = vset.pattern.permute.xlu0 0
        %1540 = vperm.xlu0 %1539, %v1502
        %v1541 = vpop.permute.xlu0 %1540
        %1544 = vset.pattern.permute.xlu0 0
        %1545 = vperm.xlu0 %1544, %v1503
        %v1546 = vpop.permute.xlu0 %1545
        %1549 = vset.pattern.permute.xlu0 0
        %1550 = vperm.xlu0 %1549, %v1504
        %v1551 = vpop.permute.xlu0 %1550
        %1554 = vset.pattern.permute.xlu0 0
        %1555 = vperm.xlu0 %1554, %v1505
        %v1556 = vpop.permute.xlu0 %1555
        %1559 = vset.pattern.permute.xlu0 0
        %1560 = vperm.xlu0 %1559, %v1506
        %v1561 = vpop.permute.xlu0 %1560
        %1564 = vset.pattern.permute.xlu0 0
        %1565 = vperm.xlu0 %1564, %v1507
        %v1566 = vpop.permute.xlu0 %1565
        %1569 = vset.pattern.permute.xlu0 0
        %1570 = vperm.xlu0 %1569, %v1508
        %v1571 = vpop.permute.xlu0 %1570
        %1574 = vset.pattern.permute.xlu0 0
        %1575 = vperm.xlu0 %1574, %v1509
        %v1576 = vpop.permute.xlu0 %1575
        %1579 = vset.pattern.permute.xlu0 0
        %1580 = vperm.xlu0 %1579, %v1510
        %v1581 = vpop.permute.xlu0 %1580
        %1584 = vset.pattern.permute.xlu0 0
        %1585 = vperm.xlu0 %1584, %v1511
        %v1586 = vpop.permute.xlu0 %1585
        %1589 = vset.pattern.permute.xlu0 0
        %1590 = vperm.xlu0 %1589, %v1512
        %v1591 = vpop.permute.xlu0 %1590
        %1594 = vset.pattern.permute.xlu0 0
        %1595 = vperm.xlu0 %1594, %v1513
        %v1596 = vpop.permute.xlu0 %1595
        %1599 = vset.pattern.permute.xlu0 0
        %1600 = vperm.xlu0 %1599, %v1514
        %v1601 = vpop.permute.xlu0 %1600
        %1604 = vset.pattern.permute.xlu0 0
        %1605 = vperm.xlu0 %1604, %v1515
        %v1606 = vpop.permute.xlu0 %1605
        %1609 = vset.pattern.permute.xlu0 0
        %1610 = vperm.xlu0 %1609, %v1516
        %v1611 = vpop.permute.xlu0 %1610
        %1614 = vset.pattern.permute.xlu0 0
        %1615 = vperm.xlu0 %1614, %v1517
        %v1616 = vpop.permute.xlu0 %1615
        %1619 = vset.pattern.permute.xlu0 0
        %1620 = vperm.xlu0 %1619, %v1518
        %v1621 = vpop.permute.xlu0 %1620
        %1624 = vset.pattern.permute.xlu0 0
        %1625 = vperm.xlu0 %1624, %v1519
        %v1626 = vpop.permute.xlu0 %1625
        %1629 = vset.pattern.permute.xlu0 0
        %1630 = vperm.xlu0 %1629, %v1520
        %v1631 = vpop.permute.xlu0 %1630
        %1634 = vset.pattern.permute.xlu0 0
        %1635 = vperm.xlu0 %1634, %v1521
        %v1636 = vpop.permute.xlu0 %1635
        %1639 = vset.pattern.permute.xlu0 0
        %1640 = vperm.xlu0 %1639, %v1522
        %v1641 = vpop.permute.xlu0 %1640
        %1644 = vset.pattern.permute.xlu0 0
        %1645 = vperm.xlu0 %1644, %v1523
        %v1646 = vpop.permute.xlu0 %1645
        %1649 = vset.pattern.permute.xlu0 0
        %1650 = vperm.xlu0 %1649, %v1524
        %v1651 = vpop.permute.xlu0 %1650
        %1654 = vset.pattern.permute.xlu0 0
        %1655 = vperm.xlu0 %1654, %v1525
        %v1656 = vpop.permute.xlu0 %1655
        %1659 = vset.pattern.permute.xlu0 0
        %1660 = vperm.xlu0 %1659, %v1526
        %v1661 = vpop.permute.xlu0 %1660
        %1664 = vset.pattern.permute.xlu0 0
        %1665 = vperm.xlu0 %1664, %v1527
        %v1666 = vpop.permute.xlu0 %1665
        %1669 = vset.pattern.permute.xlu0 0
        %1670 = vperm.xlu0 %1669, %v1528
        %v1671 = vpop.permute.xlu0 %1670
        %1674 = vset.pattern.permute.xlu0 0
        %1675 = vperm.xlu0 %1674, %v1529
        %v1676 = vpop.permute.xlu0 %1675
        %1679 = vset.pattern.permute.xlu0 0
        %1680 = vperm.xlu0 %1679, %v1530
        %v1681 = vpop.permute.xlu0 %1680
        %1684 = vset.pattern.permute.xlu0 0
        %1685 = vperm.xlu0 %1684, %v1531
        %v1686 = vpop.permute.xlu0 %1685
        %1689 = vset.pattern.permute.xlu0 0
        %1690 = vperm.xlu0 %1689, %v1532
        %v1691 = vpop.permute.xlu0 %1690
        %v1694 = vlaneseq
        %v1695 = vshrl.u32 %v1694, 7
        %v1696 = vsub.s32 0, %v1695
        %v1697 = vrot.slane %v1496, %v1696
        %v1698 = vlaneseq
        %v1699 = vshrl.u32 %v1698, 7
        %v1700 = vsub.s32 1, %v1699
        %v1701 = vrot.slane %v1496, %v1700
        %v1704 = vmul.f32 %v1536, %v1697
        %v1705 = vmul.f32 %v1536, %v1701
        %v1706 = vmul.f32 %v1541, %v1697
        %v1707 = vmul.f32 %v1541, %v1701
        %v1708 = vmul.f32 %v1546, %v1697
        %v1709 = vmul.f32 %v1546, %v1701
        %v1710 = vmul.f32 %v1551, %v1697
        %v1711 = vmul.f32 %v1551, %v1701
        %v1712 = vmul.f32 %v1556, %v1697
        %v1713 = vmul.f32 %v1556, %v1701
        %v1714 = vmul.f32 %v1561, %v1697
        %v1715 = vmul.f32 %v1561, %v1701
        %v1716 = vmul.f32 %v1566, %v1697
        %v1717 = vmul.f32 %v1566, %v1701
        %v1718 = vmul.f32 %v1571, %v1697
        %v1719 = vmul.f32 %v1571, %v1701
        %v1720 = vmul.f32 %v1576, %v1697
        %v1721 = vmul.f32 %v1576, %v1701
        %v1722 = vmul.f32 %v1581, %v1697
        %v1723 = vmul.f32 %v1581, %v1701
        %v1724 = vmul.f32 %v1586, %v1697
        %v1725 = vmul.f32 %v1586, %v1701
        %v1726 = vmul.f32 %v1591, %v1697
        %v1727 = vmul.f32 %v1591, %v1701
        %v1728 = vmul.f32 %v1596, %v1697
        %v1729 = vmul.f32 %v1596, %v1701
        %v1730 = vmul.f32 %v1601, %v1697
        %v1731 = vmul.f32 %v1601, %v1701
        %v1732 = vmul.f32 %v1606, %v1697
        %v1733 = vmul.f32 %v1606, %v1701
        %v1734 = vmul.f32 %v1611, %v1697
        %v1735 = vmul.f32 %v1611, %v1701
        %v1736 = vmul.f32 %v1616, %v1697
        %v1737 = vmul.f32 %v1616, %v1701
        %v1738 = vmul.f32 %v1621, %v1697
        %v1739 = vmul.f32 %v1621, %v1701
        %v1740 = vmul.f32 %v1626, %v1697
        %v1741 = vmul.f32 %v1626, %v1701
        %v1742 = vmul.f32 %v1631, %v1697
        %v1743 = vmul.f32 %v1631, %v1701
        %v1744 = vmul.f32 %v1636, %v1697
        %v1745 = vmul.f32 %v1636, %v1701
        %v1746 = vmul.f32 %v1641, %v1697
        %v1747 = vmul.f32 %v1641, %v1701
        %v1748 = vmul.f32 %v1646, %v1697
        %v1749 = vmul.f32 %v1646, %v1701
        %v1750 = vmul.f32 %v1651, %v1697
        %v1751 = vmul.f32 %v1651, %v1701
        %v1752 = vmul.f32 %v1656, %v1697
        %v1753 = vmul.f32 %v1656, %v1701
        %v1754 = vmul.f32 %v1661, %v1697
        %v1755 = vmul.f32 %v1661, %v1701
        %v1756 = vmul.f32 %v1666, %v1697
        %v1757 = vmul.f32 %v1666, %v1701
        %v1758 = vmul.f32 %v1671, %v1697
        %v1759 = vmul.f32 %v1671, %v1701
        %v1760 = vmul.f32 %v1676, %v1697
        %v1761 = vmul.f32 %v1676, %v1701
        %v1762 = vmul.f32 %v1681, %v1697
        %v1763 = vmul.f32 %v1681, %v1701
        %v1764 = vmul.f32 %v1686, %v1697
        %v1765 = vmul.f32 %v1686, %v1701
        %v1766 = vmul.f32 %v1691, %v1697
        %v1767 = vmul.f32 %v1691, %v1701
        %v1769 = vlaneseq
        %v1770 = vshrl.u32 %v1769, 7
        %v1771 = vsub.s32 0, %v1770
        %v1772 = vrot.slane %v1500, %v1771
        %v1773 = vlaneseq
        %v1774 = vshrl.u32 %v1773, 7
        %v1775 = vsub.s32 1, %v1774
        %v1776 = vrot.slane %v1500, %v1775
        %v1779 = vsub.f32 %v1704, %v1772
        %v1780 = vsub.f32 %v1705, %v1776
        %v1781 = vsub.f32 %v1706, %v1772
        %v1782 = vsub.f32 %v1707, %v1776
        %v1783 = vsub.f32 %v1708, %v1772
        %v1784 = vsub.f32 %v1709, %v1776
        %v1785 = vsub.f32 %v1710, %v1772
        %v1786 = vsub.f32 %v1711, %v1776
        %v1787 = vsub.f32 %v1712, %v1772
        %v1788 = vsub.f32 %v1713, %v1776
        %v1789 = vsub.f32 %v1714, %v1772
        %v1790 = vsub.f32 %v1715, %v1776
        %v1791 = vsub.f32 %v1716, %v1772
        %v1792 = vsub.f32 %v1717, %v1776
        %v1793 = vsub.f32 %v1718, %v1772
        %v1794 = vsub.f32 %v1719, %v1776
        %v1795 = vsub.f32 %v1720, %v1772
        %v1796 = vsub.f32 %v1721, %v1776
        %v1797 = vsub.f32 %v1722, %v1772
        %v1798 = vsub.f32 %v1723, %v1776
        %v1799 = vsub.f32 %v1724, %v1772
        %v1800 = vsub.f32 %v1725, %v1776
        %v1801 = vsub.f32 %v1726, %v1772
        %v1802 = vsub.f32 %v1727, %v1776
        %v1803 = vsub.f32 %v1728, %v1772
        %v1804 = vsub.f32 %v1729, %v1776
        %v1805 = vsub.f32 %v1730, %v1772
        %v1806 = vsub.f32 %v1731, %v1776
        %v1807 = vsub.f32 %v1732, %v1772
        %v1808 = vsub.f32 %v1733, %v1776
        %v1809 = vsub.f32 %v1734, %v1772
        %v1810 = vsub.f32 %v1735, %v1776
        %v1811 = vsub.f32 %v1736, %v1772
        %v1812 = vsub.f32 %v1737, %v1776
        %v1813 = vsub.f32 %v1738, %v1772
        %v1814 = vsub.f32 %v1739, %v1776
        %v1815 = vsub.f32 %v1740, %v1772
        %v1816 = vsub.f32 %v1741, %v1776
        %v1817 = vsub.f32 %v1742, %v1772
        %v1818 = vsub.f32 %v1743, %v1776
        %v1819 = vsub.f32 %v1744, %v1772
        %v1820 = vsub.f32 %v1745, %v1776
        %v1821 = vsub.f32 %v1746, %v1772
        %v1822 = vsub.f32 %v1747, %v1776
        %v1823 = vsub.f32 %v1748, %v1772
        %v1824 = vsub.f32 %v1749, %v1776
        %v1825 = vsub.f32 %v1750, %v1772
        %v1826 = vsub.f32 %v1751, %v1776
        %v1827 = vsub.f32 %v1752, %v1772
        %v1828 = vsub.f32 %v1753, %v1776
        %v1829 = vsub.f32 %v1754, %v1772
        %v1830 = vsub.f32 %v1755, %v1776
        %v1831 = vsub.f32 %v1756, %v1772
        %v1832 = vsub.f32 %v1757, %v1776
        %v1833 = vsub.f32 %v1758, %v1772
        %v1834 = vsub.f32 %v1759, %v1776
        %v1835 = vsub.f32 %v1760, %v1772
        %v1836 = vsub.f32 %v1761, %v1776
        %v1837 = vsub.f32 %v1762, %v1772
        %v1838 = vsub.f32 %v1763, %v1776
        %v1839 = vsub.f32 %v1764, %v1772
        %v1840 = vsub.f32 %v1765, %v1776
        %v1841 = vsub.f32 %v1766, %v1772
        %v1842 = vsub.f32 %v1767, %v1776
        %v1843 = vmul.f32 %v1779, 1.442695
        %v1844 = vpow.pop %v1843
        %v1845 = vmul.f32 %v1780, 1.442695
        %v1846 = vpow.pop %v1845
        %v1847 = vmul.f32 %v1781, 1.442695
        %v1848 = vpow.pop %v1847
        %v1849 = vmul.f32 %v1782, 1.442695
        %v1850 = vpow.pop %v1849
        %v1851 = vmul.f32 %v1783, 1.442695
        %v1852 = vpow.pop %v1851
        %v1853 = vmul.f32 %v1784, 1.442695
        %v1854 = vpow.pop %v1853
        %v1855 = vmul.f32 %v1785, 1.442695
        %v1856 = vpow.pop %v1855
        %v1857 = vmul.f32 %v1786, 1.442695
        %v1858 = vpow.pop %v1857
        %v1859 = vmul.f32 %v1787, 1.442695
        %v1860 = vpow.pop %v1859
        %v1861 = vmul.f32 %v1788, 1.442695
        %v1862 = vpow.pop %v1861
        %v1863 = vmul.f32 %v1789, 1.442695
        %v1864 = vpow.pop %v1863
        %v1865 = vmul.f32 %v1790, 1.442695
        %v1866 = vpow.pop %v1865
        %v1867 = vmul.f32 %v1791, 1.442695
        %v1868 = vpow.pop %v1867
        %v1869 = vmul.f32 %v1792, 1.442695
        %v1870 = vpow.pop %v1869
        %v1871 = vmul.f32 %v1793, 1.442695
        %v1872 = vpow.pop %v1871
        %v1873 = vmul.f32 %v1794, 1.442695
        %v1874 = vpow.pop %v1873
        %v1875 = vmul.f32 %v1795, 1.442695
        %v1876 = vpow.pop %v1875
        %v1877 = vmul.f32 %v1796, 1.442695
        %v1878 = vpow.pop %v1877
        %v1879 = vmul.f32 %v1797, 1.442695
        %v1880 = vpow.pop %v1879
        %v1881 = vmul.f32 %v1798, 1.442695
        %v1882 = vpow.pop %v1881
        %v1883 = vmul.f32 %v1799, 1.442695
        %v1884 = vpow.pop %v1883
        %v1885 = vmul.f32 %v1800, 1.442695
        %v1886 = vpow.pop %v1885
        %v1887 = vmul.f32 %v1801, 1.442695
        %v1888 = vpow.pop %v1887
        %v1889 = vmul.f32 %v1802, 1.442695
        %v1890 = vpow.pop %v1889
        %v1891 = vmul.f32 %v1803, 1.442695
        %v1892 = vpow.pop %v1891
        %v1893 = vmul.f32 %v1804, 1.442695
        %v1894 = vpow.pop %v1893
        %v1895 = vmul.f32 %v1805, 1.442695
        %v1896 = vpow.pop %v1895
        %v1897 = vmul.f32 %v1806, 1.442695
        %v1898 = vpow.pop %v1897
        %v1899 = vmul.f32 %v1807, 1.442695
        %v1900 = vpow.pop %v1899
        %v1901 = vmul.f32 %v1808, 1.442695
        %v1902 = vpow.pop %v1901
        %v1903 = vmul.f32 %v1809, 1.442695
        %v1904 = vpow.pop %v1903
        %v1905 = vmul.f32 %v1810, 1.442695
        %v1906 = vpow.pop %v1905
        %v1907 = vmul.f32 %v1811, 1.442695
        %v1908 = vpow.pop %v1907
        %v1909 = vmul.f32 %v1812, 1.442695
        %v1910 = vpow.pop %v1909
        %v1911 = vmul.f32 %v1813, 1.442695
        %v1912 = vpow.pop %v1911
        %v1913 = vmul.f32 %v1814, 1.442695
        %v1914 = vpow.pop %v1913
        %v1915 = vmul.f32 %v1815, 1.442695
        %v1916 = vpow.pop %v1915
        %v1917 = vmul.f32 %v1816, 1.442695
        %v1918 = vpow.pop %v1917
        %v1919 = vmul.f32 %v1817, 1.442695
        %v1920 = vpow.pop %v1919
        %v1921 = vmul.f32 %v1818, 1.442695
        %v1922 = vpow.pop %v1921
        %v1923 = vmul.f32 %v1819, 1.442695
        %v1924 = vpow.pop %v1923
        %v1925 = vmul.f32 %v1820, 1.442695
        %v1926 = vpow.pop %v1925
        %v1927 = vmul.f32 %v1821, 1.442695
        %v1928 = vpow.pop %v1927
        %v1929 = vmul.f32 %v1822, 1.442695
        %v1930 = vpow.pop %v1929
        %v1931 = vmul.f32 %v1823, 1.442695
        %v1932 = vpow.pop %v1931
        %v1933 = vmul.f32 %v1824, 1.442695
        %v1934 = vpow.pop %v1933
        %v1935 = vmul.f32 %v1825, 1.442695
        %v1936 = vpow.pop %v1935
        %v1937 = vmul.f32 %v1826, 1.442695
        %v1938 = vpow.pop %v1937
        %v1939 = vmul.f32 %v1827, 1.442695
        %v1940 = vpow.pop %v1939
        %v1941 = vmul.f32 %v1828, 1.442695
        %v1942 = vpow.pop %v1941
        %v1943 = vmul.f32 %v1829, 1.442695
        %v1944 = vpow.pop %v1943
        %v1945 = vmul.f32 %v1830, 1.442695
        %v1946 = vpow.pop %v1945
        %v1947 = vmul.f32 %v1831, 1.442695
        %v1948 = vpow.pop %v1947
        %v1949 = vmul.f32 %v1832, 1.442695
        %v1950 = vpow.pop %v1949
        %v1951 = vmul.f32 %v1833, 1.442695
        %v1952 = vpow.pop %v1951
        %v1953 = vmul.f32 %v1834, 1.442695
        %v1954 = vpow.pop %v1953
        %v1955 = vmul.f32 %v1835, 1.442695
        %v1956 = vpow.pop %v1955
        %v1957 = vmul.f32 %v1836, 1.442695
        %v1958 = vpow.pop %v1957
        %v1959 = vmul.f32 %v1837, 1.442695
        %v1960 = vpow.pop %v1959
        %v1961 = vmul.f32 %v1838, 1.442695
        %v1962 = vpow.pop %v1961
        %v1963 = vmul.f32 %v1839, 1.442695
        %v1964 = vpow.pop %v1963
        %v1965 = vmul.f32 %v1840, 1.442695
        %v1966 = vpow.pop %v1965
        %v1967 = vmul.f32 %v1841, 1.442695
        %v1968 = vpow.pop %v1967
        %v1969 = vmul.f32 %v1842, 1.442695
        %v1970 = vpow.pop %v1969
        %s1971 = sadd.s32 0, 4
        %s1972 = scalar_lea.vmem %s263, %s1971
        %v1973 = vld [vmem:[%s1972] sm:$0x3]
        %v1975 = vlaneseq
        %v1976 = vshrl.u32 %v1975, 7
        %v1977 = vsub.s32 0, %v1976
        %v1978 = vrot.slane %v1973, %v1977
        %v1979 = vlaneseq
        %v1980 = vshrl.u32 %v1979, 7
        %v1981 = vsub.s32 1, %v1980
        %v1982 = vrot.slane %v1973, %v1981
        %v1985 = vsel %vm280, %v1978, 1.0
        %v1986 = vsel %vm280, %v1982, 1.0
        %1987 = vmatprep.subr.mxu0 %v1906
        %1988 = vmatpush1.msra.mxu0 %v1904
        %1989 = vmatprep.subr.mxu0 %v1902
        %1990 = vmatpush1.msra.mxu0 %v1900
        %1991 = vmatprep.subr.mxu0 %v1898
        %1992 = vmatpush1.msra.mxu0 %v1896
        %1993 = vmatprep.subr.mxu0 %v1894
        %1994 = vmatpush1.msra.mxu0 %v1892
        %1995 = vmatprep.subr.mxu0 %v1890
        %1996 = vmatpush1.msra.mxu0 %v1888
        %1997 = vmatprep.subr.mxu0 %v1886
        %1998 = vmatpush1.msra.mxu0 %v1884
        %1999 = vmatprep.subr.mxu0 %v1882
        %2000 = vmatpush1.msra.mxu0 %v1880
        %2001 = vmatprep.subr.mxu0 %v1878
        %2002 = vmatpush1.msra.mxu0 %v1876
        %2003 = vmatprep.subr.mxu0 %v1874
        %2004 = vmatpush1.msra.mxu0 %v1872
        %2005 = vmatprep.subr.mxu0 %v1870
        %2006 = vmatpush1.msra.mxu0 %v1868
        %2007 = vmatprep.subr.mxu0 %v1866
        %2008 = vmatpush1.msra.mxu0 %v1864
        %2009 = vmatprep.subr.mxu0 %v1862
        %2010 = vmatpush1.msra.mxu0 %v1860
        %2011 = vmatprep.subr.mxu0 %v1858
        %2012 = vmatpush1.msra.mxu0 %v1856
        %2013 = vmatprep.subr.mxu0 %v1854
        %2014 = vmatpush1.msra.mxu0 %v1852
        %2015 = vmatprep.subr.mxu0 %v1850
        %2016 = vmatpush1.msra.mxu0 %v1848
        %2017 = vmatprep.subr.mxu0 %v1846
        %2018 = vmatpush1.msra.mxu0 %v1844
        %2019 = vmatprep.subr.mxu0 %v1970
        %2020 = vmatpush2.msra.mxu0 %v1968
        %2021 = vmatprep.subr.mxu0 %v1966
        %2022 = vmatpush2.msra.mxu0 %v1964
        %2023 = vmatprep.subr.mxu0 %v1962
        %2024 = vmatpush2.msra.mxu0 %v1960
        %2025 = vmatprep.subr.mxu0 %v1958
        %2026 = vmatpush2.msra.mxu0 %v1956
        %2027 = vmatprep.subr.mxu0 %v1954
        %2028 = vmatpush2.msra.mxu0 %v1952
        %2029 = vmatprep.subr.mxu0 %v1950
        %2030 = vmatpush2.msra.mxu0 %v1948
        %2031 = vmatprep.subr.mxu0 %v1946
        %2032 = vmatpush2.msra.mxu0 %v1944
        %2033 = vmatprep.subr.mxu0 %v1942
        %2034 = vmatpush2.msra.mxu0 %v1940
        %2035 = vmatprep.subr.mxu0 %v1938
        %2036 = vmatpush2.msra.mxu0 %v1936
        %2037 = vmatprep.subr.mxu0 %v1934
        %2038 = vmatpush2.msra.mxu0 %v1932
        %2039 = vmatprep.subr.mxu0 %v1930
        %2040 = vmatpush2.msra.mxu0 %v1928
        %2041 = vmatprep.subr.mxu0 %v1926
        %2042 = vmatpush2.msra.mxu0 %v1924
        %2043 = vmatprep.subr.mxu0 %v1922
        %2044 = vmatpush2.msra.mxu0 %v1920
        %2045 = vmatprep.subr.mxu0 %v1918
        %2046 = vmatpush2.msra.mxu0 %v1916
        %2047 = vmatprep.subr.mxu0 %v1914
        %2048 = vmatpush2.msra.mxu0 %v1912
        %2049 = vmatprep.subr.mxu0 %v1910
        %2050 = vmatpush2.msra.mxu0 %v1908
        %2051 = vmatprep.mubr.f32.mxu0 %v1986
        %2052 = vmatmul.mubr.f32.gmra.mxu0 %v1985
        %v2053 = vpop.f32.mrf.mxu0
        %v2054 = vadd.f32 0.0, %v2053
        %v2055 = vpop.f32.mrf.mxu0
        %v2056 = vadd.f32 0.0, %v2055
        %2057 = vdwg.mxu0
        %v2058 = vrcp.pop %v2054
        %v2059 = vrcp.pop %v2056
        %v2060 = vmul.f32 %v2054, %v2058
        %v2061 = vmul.f32 %v2056, %v2059
        %v2062 = vsub.f32 2.0, %v2060
        %v2063 = vsub.f32 2.0, %v2061
        %v2064 = vmul.f32 %v2058, %v2062
        %v2065 = vmul.f32 %v2059, %v2063
        %v2066 = vmul.f32 %v854, %v2054
        %v2067 = vmul.f32 %v854, %v2056
        %v2070 = vrot.slane %v2064, 1
        %v2071 = vrot.slane %v2065, 1
        %v2074 = vmul.f32 %v2066, %v2070
        %v2075 = vmul.f32 %v2067, %v2071
        %v2076 = vadd.f32 %v2074, %v1697
        %v2077 = vadd.f32 %v2075, %v1701
        %v2080 = vcombine.low %v2076, %v2077
        %v2082 = vunpack.c.l.s4 1966171168
        %v2083 = vunpack.c.0.s8 %v2082
        %v2084 = vlaneseq
        %v2085 = vshrl.u32 %v2084, 7
        %v2086 = vsub.s32 %v2083, %v2085
        %v2087 = vrot.slane %v2080, %v2086
        %v2089 = vunpack.c.l.s4 1966171168
        %v2090 = vunpack.c.0.s8 %v2089
        %v2091 = vlaneseq
        %v2092 = vshrl.u32 %v2091, 7
        %v2093 = vsub.s32 %v2090, %v2092
        %v2094 = vrot.slane %v2087, %v2093
        %s2096 = scalar_lea.vmem %s254, 4 [#allocation6]
        %2097 = vst.msk [vmem:[%s2096] sm:$0x3] %vm888, %v2094
        %s2098 = sadd.s32 %s281, 6
        %s2099 = scalar_lea.vmem %s263, %s2098
        %v2100 = vld [vmem:[%s2099] sm:$0x3]
        %vm2101 = vcmp.ge.f32.partialorder %v2100, 0.0
        %v2102 = vmul.f32 %v2100, %v286
        %v2103 = vmul.f32 %v2100, %v288
        %v2104 = vsel %vm2101, %v2102, %v2103
        %v2105 = vld [vmem:[%s269] sm:$0xff]
        %v2106 = vld [vmem:[%s269 + $0x8] sm:$0xff]
        %v2107 = vld [vmem:[%s269 + $0x10] sm:$0xff]
        %v2108 = vld [vmem:[%s269 + $0x18] sm:$0xff]
        %v2109 = vld [vmem:[%s269 + $0x20] sm:$0xff]
        %v2110 = vld [vmem:[%s269 + $0x28] sm:$0xff]
        %v2111 = vld [vmem:[%s269 + $0x30] sm:$0xff]
        %v2112 = vld [vmem:[%s269 + $0x38] sm:$0xff]
        %v2113 = vld [vmem:[%s269 + $0x40] sm:$0xff]
        %v2114 = vld [vmem:[%s269 + $0x48] sm:$0xff]
        %v2115 = vld [vmem:[%s269 + $0x50] sm:$0xff]
        %v2116 = vld [vmem:[%s269 + $0x58] sm:$0xff]
        %v2117 = vld [vmem:[%s269 + $0x60] sm:$0xff]
        %v2118 = vld [vmem:[%s269 + $0x68] sm:$0xff]
        %v2119 = vld [vmem:[%s269 + $0x70] sm:$0xff]
        %v2120 = vld [vmem:[%s269 + $0x78] sm:$0xff]
        %v2121 = vld [vmem:[%s269 + $0x80] sm:$0xff]
        %v2122 = vld [vmem:[%s269 + $0x88] sm:$0xff]
        %v2123 = vld [vmem:[%s269 + $0x90] sm:$0xff]
        %v2124 = vld [vmem:[%s269 + $0x98] sm:$0xff]
        %v2125 = vld [vmem:[%s269 + $0xa0] sm:$0xff]
        %v2126 = vld [vmem:[%s269 + $0xa8] sm:$0xff]
        %v2127 = vld [vmem:[%s269 + $0xb0] sm:$0xff]
        %v2128 = vld [vmem:[%s269 + $0xb8] sm:$0xff]
        %v2129 = vld [vmem:[%s269 + $0xc0] sm:$0xff]
        %v2130 = vld [vmem:[%s269 + $0xc8] sm:$0xff]
        %v2131 = vld [vmem:[%s269 + $0xd0] sm:$0xff]
        %v2132 = vld [vmem:[%s269 + $0xd8] sm:$0xff]
        %v2133 = vld [vmem:[%s269 + $0xe0] sm:$0xff]
        %v2134 = vld [vmem:[%s269 + $0xe8] sm:$0xff]
        %v2135 = vld [vmem:[%s269 + $0xf0] sm:$0xff]
        %v2136 = vld [vmem:[%s269 + $0xf8] sm:$0xff]
        %2138 = vset.pattern.permute.xlu0 0
        %2139 = vperm.xlu0 %2138, %v2105
        %v2140 = vpop.permute.xlu0 %2139
        %2143 = vset.pattern.permute.xlu0 0
        %2144 = vperm.xlu0 %2143, %v2106
        %v2145 = vpop.permute.xlu0 %2144
        %2148 = vset.pattern.permute.xlu0 0
        %2149 = vperm.xlu0 %2148, %v2107
        %v2150 = vpop.permute.xlu0 %2149
        %2153 = vset.pattern.permute.xlu0 0
        %2154 = vperm.xlu0 %2153, %v2108
        %v2155 = vpop.permute.xlu0 %2154
        %2158 = vset.pattern.permute.xlu0 0
        %2159 = vperm.xlu0 %2158, %v2109
        %v2160 = vpop.permute.xlu0 %2159
        %2163 = vset.pattern.permute.xlu0 0
        %2164 = vperm.xlu0 %2163, %v2110
        %v2165 = vpop.permute.xlu0 %2164
        %2168 = vset.pattern.permute.xlu0 0
        %2169 = vperm.xlu0 %2168, %v2111
        %v2170 = vpop.permute.xlu0 %2169
        %2173 = vset.pattern.permute.xlu0 0
        %2174 = vperm.xlu0 %2173, %v2112
        %v2175 = vpop.permute.xlu0 %2174
        %2178 = vset.pattern.permute.xlu0 0
        %2179 = vperm.xlu0 %2178, %v2113
        %v2180 = vpop.permute.xlu0 %2179
        %2183 = vset.pattern.permute.xlu0 0
        %2184 = vperm.xlu0 %2183, %v2114
        %v2185 = vpop.permute.xlu0 %2184
        %2188 = vset.pattern.permute.xlu0 0
        %2189 = vperm.xlu0 %2188, %v2115
        %v2190 = vpop.permute.xlu0 %2189
        %2193 = vset.pattern.permute.xlu0 0
        %2194 = vperm.xlu0 %2193, %v2116
        %v2195 = vpop.permute.xlu0 %2194
        %2198 = vset.pattern.permute.xlu0 0
        %2199 = vperm.xlu0 %2198, %v2117
        %v2200 = vpop.permute.xlu0 %2199
        %2203 = vset.pattern.permute.xlu0 0
        %2204 = vperm.xlu0 %2203, %v2118
        %v2205 = vpop.permute.xlu0 %2204
        %2208 = vset.pattern.permute.xlu0 0
        %2209 = vperm.xlu0 %2208, %v2119
        %v2210 = vpop.permute.xlu0 %2209
        %2213 = vset.pattern.permute.xlu0 0
        %2214 = vperm.xlu0 %2213, %v2120
        %v2215 = vpop.permute.xlu0 %2214
        %2218 = vset.pattern.permute.xlu0 0
        %2219 = vperm.xlu0 %2218, %v2121
        %v2220 = vpop.permute.xlu0 %2219
        %2223 = vset.pattern.permute.xlu0 0
        %2224 = vperm.xlu0 %2223, %v2122
        %v2225 = vpop.permute.xlu0 %2224
        %2228 = vset.pattern.permute.xlu0 0
        %2229 = vperm.xlu0 %2228, %v2123
        %v2230 = vpop.permute.xlu0 %2229
        %2233 = vset.pattern.permute.xlu0 0
        %2234 = vperm.xlu0 %2233, %v2124
        %v2235 = vpop.permute.xlu0 %2234
        %2238 = vset.pattern.permute.xlu0 0
        %2239 = vperm.xlu0 %2238, %v2125
        %v2240 = vpop.permute.xlu0 %2239
        %2243 = vset.pattern.permute.xlu0 0
        %2244 = vperm.xlu0 %2243, %v2126
        %v2245 = vpop.permute.xlu0 %2244
        %2248 = vset.pattern.permute.xlu0 0
        %2249 = vperm.xlu0 %2248, %v2127
        %v2250 = vpop.permute.xlu0 %2249
        %2253 = vset.pattern.permute.xlu0 0
        %2254 = vperm.xlu0 %2253, %v2128
        %v2255 = vpop.permute.xlu0 %2254
        %2258 = vset.pattern.permute.xlu0 0
        %2259 = vperm.xlu0 %2258, %v2129
        %v2260 = vpop.permute.xlu0 %2259
        %2263 = vset.pattern.permute.xlu0 0
        %2264 = vperm.xlu0 %2263, %v2130
        %v2265 = vpop.permute.xlu0 %2264
        %2268 = vset.pattern.permute.xlu0 0
        %2269 = vperm.xlu0 %2268, %v2131
        %v2270 = vpop.permute.xlu0 %2269
        %2273 = vset.pattern.permute.xlu0 0
        %2274 = vperm.xlu0 %2273, %v2132
        %v2275 = vpop.permute.xlu0 %2274
        %2278 = vset.pattern.permute.xlu0 0
        %2279 = vperm.xlu0 %2278, %v2133
        %v2280 = vpop.permute.xlu0 %2279
        %2283 = vset.pattern.permute.xlu0 0
        %2284 = vperm.xlu0 %2283, %v2134
        %v2285 = vpop.permute.xlu0 %2284
        %2288 = vset.pattern.permute.xlu0 0
        %2289 = vperm.xlu0 %2288, %v2135
        %v2290 = vpop.permute.xlu0 %2289
        %2293 = vset.pattern.permute.xlu0 0
        %2294 = vperm.xlu0 %2293, %v2136
        %v2295 = vpop.permute.xlu0 %2294
        %v2298 = vlaneseq
        %v2299 = vshrl.u32 %v2298, 7
        %v2300 = vsub.s32 0, %v2299
        %v2301 = vrot.slane %v2100, %v2300
        %v2302 = vlaneseq
        %v2303 = vshrl.u32 %v2302, 7
        %v2304 = vsub.s32 1, %v2303
        %v2305 = vrot.slane %v2100, %v2304
        %v2308 = vmul.f32 %v2140, %v2301
        %v2309 = vmul.f32 %v2140, %v2305
        %v2310 = vmul.f32 %v2145, %v2301
        %v2311 = vmul.f32 %v2145, %v2305
        %v2312 = vmul.f32 %v2150, %v2301
        %v2313 = vmul.f32 %v2150, %v2305
        %v2314 = vmul.f32 %v2155, %v2301
        %v2315 = vmul.f32 %v2155, %v2305
        %v2316 = vmul.f32 %v2160, %v2301
        %v2317 = vmul.f32 %v2160, %v2305
        %v2318 = vmul.f32 %v2165, %v2301
        %v2319 = vmul.f32 %v2165, %v2305
        %v2320 = vmul.f32 %v2170, %v2301
        %v2321 = vmul.f32 %v2170, %v2305
        %v2322 = vmul.f32 %v2175, %v2301
        %v2323 = vmul.f32 %v2175, %v2305
        %v2324 = vmul.f32 %v2180, %v2301
        %v2325 = vmul.f32 %v2180, %v2305
        %v2326 = vmul.f32 %v2185, %v2301
        %v2327 = vmul.f32 %v2185, %v2305
        %v2328 = vmul.f32 %v2190, %v2301
        %v2329 = vmul.f32 %v2190, %v2305
        %v2330 = vmul.f32 %v2195, %v2301
        %v2331 = vmul.f32 %v2195, %v2305
        %v2332 = vmul.f32 %v2200, %v2301
        %v2333 = vmul.f32 %v2200, %v2305
        %v2334 = vmul.f32 %v2205, %v2301
        %v2335 = vmul.f32 %v2205, %v2305
        %v2336 = vmul.f32 %v2210, %v2301
        %v2337 = vmul.f32 %v2210, %v2305
        %v2338 = vmul.f32 %v2215, %v2301
        %v2339 = vmul.f32 %v2215, %v2305
        %v2340 = vmul.f32 %v2220, %v2301
        %v2341 = vmul.f32 %v2220, %v2305
        %v2342 = vmul.f32 %v2225, %v2301
        %v2343 = vmul.f32 %v2225, %v2305
        %v2344 = vmul.f32 %v2230, %v2301
        %v2345 = vmul.f32 %v2230, %v2305
        %v2346 = vmul.f32 %v2235, %v2301
        %v2347 = vmul.f32 %v2235, %v2305
        %v2348 = vmul.f32 %v2240, %v2301
        %v2349 = vmul.f32 %v2240, %v2305
        %v2350 = vmul.f32 %v2245, %v2301
        %v2351 = vmul.f32 %v2245, %v2305
        %v2352 = vmul.f32 %v2250, %v2301
        %v2353 = vmul.f32 %v2250, %v2305
        %v2354 = vmul.f32 %v2255, %v2301
        %v2355 = vmul.f32 %v2255, %v2305
        %v2356 = vmul.f32 %v2260, %v2301
        %v2357 = vmul.f32 %v2260, %v2305
        %v2358 = vmul.f32 %v2265, %v2301
        %v2359 = vmul.f32 %v2265, %v2305
        %v2360 = vmul.f32 %v2270, %v2301
        %v2361 = vmul.f32 %v2270, %v2305
        %v2362 = vmul.f32 %v2275, %v2301
        %v2363 = vmul.f32 %v2275, %v2305
        %v2364 = vmul.f32 %v2280, %v2301
        %v2365 = vmul.f32 %v2280, %v2305
        %v2366 = vmul.f32 %v2285, %v2301
        %v2367 = vmul.f32 %v2285, %v2305
        %v2368 = vmul.f32 %v2290, %v2301
        %v2369 = vmul.f32 %v2290, %v2305
        %v2370 = vmul.f32 %v2295, %v2301
        %v2371 = vmul.f32 %v2295, %v2305
        %v2373 = vlaneseq
        %v2374 = vshrl.u32 %v2373, 7
        %v2375 = vsub.s32 0, %v2374
        %v2376 = vrot.slane %v2104, %v2375
        %v2377 = vlaneseq
        %v2378 = vshrl.u32 %v2377, 7
        %v2379 = vsub.s32 1, %v2378
        %v2380 = vrot.slane %v2104, %v2379
        %v2383 = vsub.f32 %v2308, %v2376
        %v2384 = vsub.f32 %v2309, %v2380
        %v2385 = vsub.f32 %v2310, %v2376
        %v2386 = vsub.f32 %v2311, %v2380
        %v2387 = vsub.f32 %v2312, %v2376
        %v2388 = vsub.f32 %v2313, %v2380
        %v2389 = vsub.f32 %v2314, %v2376
        %v2390 = vsub.f32 %v2315, %v2380
        %v2391 = vsub.f32 %v2316, %v2376
        %v2392 = vsub.f32 %v2317, %v2380
        %v2393 = vsub.f32 %v2318, %v2376
        %v2394 = vsub.f32 %v2319, %v2380
        %v2395 = vsub.f32 %v2320, %v2376
        %v2396 = vsub.f32 %v2321, %v2380
        %v2397 = vsub.f32 %v2322, %v2376
        %v2398 = vsub.f32 %v2323, %v2380
        %v2399 = vsub.f32 %v2324, %v2376
        %v2400 = vsub.f32 %v2325, %v2380
        %v2401 = vsub.f32 %v2326, %v2376
        %v2402 = vsub.f32 %v2327, %v2380
        %v2403 = vsub.f32 %v2328, %v2376
        %v2404 = vsub.f32 %v2329, %v2380
        %v2405 = vsub.f32 %v2330, %v2376
        %v2406 = vsub.f32 %v2331, %v2380
        %v2407 = vsub.f32 %v2332, %v2376
        %v2408 = vsub.f32 %v2333, %v2380
        %v2409 = vsub.f32 %v2334, %v2376
        %v2410 = vsub.f32 %v2335, %v2380
        %v2411 = vsub.f32 %v2336, %v2376
        %v2412 = vsub.f32 %v2337, %v2380
        %v2413 = vsub.f32 %v2338, %v2376
        %v2414 = vsub.f32 %v2339, %v2380
        %v2415 = vsub.f32 %v2340, %v2376
        %v2416 = vsub.f32 %v2341, %v2380
        %v2417 = vsub.f32 %v2342, %v2376
        %v2418 = vsub.f32 %v2343, %v2380
        %v2419 = vsub.f32 %v2344, %v2376
        %v2420 = vsub.f32 %v2345, %v2380
        %v2421 = vsub.f32 %v2346, %v2376
        %v2422 = vsub.f32 %v2347, %v2380
        %v2423 = vsub.f32 %v2348, %v2376
        %v2424 = vsub.f32 %v2349, %v2380
        %v2425 = vsub.f32 %v2350, %v2376
        %v2426 = vsub.f32 %v2351, %v2380
        %v2427 = vsub.f32 %v2352, %v2376
        %v2428 = vsub.f32 %v2353, %v2380
        %v2429 = vsub.f32 %v2354, %v2376
        %v2430 = vsub.f32 %v2355, %v2380
        %v2431 = vsub.f32 %v2356, %v2376
        %v2432 = vsub.f32 %v2357, %v2380
        %v2433 = vsub.f32 %v2358, %v2376
        %v2434 = vsub.f32 %v2359, %v2380
        %v2435 = vsub.f32 %v2360, %v2376
        %v2436 = vsub.f32 %v2361, %v2380
        %v2437 = vsub.f32 %v2362, %v2376
        %v2438 = vsub.f32 %v2363, %v2380
        %v2439 = vsub.f32 %v2364, %v2376
        %v2440 = vsub.f32 %v2365, %v2380
        %v2441 = vsub.f32 %v2366, %v2376
        %v2442 = vsub.f32 %v2367, %v2380
        %v2443 = vsub.f32 %v2368, %v2376
        %v2444 = vsub.f32 %v2369, %v2380
        %v2445 = vsub.f32 %v2370, %v2376
        %v2446 = vsub.f32 %v2371, %v2380
        %v2447 = vmul.f32 %v2383, 1.442695
        %v2448 = vpow.pop %v2447
        %v2449 = vmul.f32 %v2384, 1.442695
        %v2450 = vpow.pop %v2449
        %v2451 = vmul.f32 %v2385, 1.442695
        %v2452 = vpow.pop %v2451
        %v2453 = vmul.f32 %v2386, 1.442695
        %v2454 = vpow.pop %v2453
        %v2455 = vmul.f32 %v2387, 1.442695
        %v2456 = vpow.pop %v2455
        %v2457 = vmul.f32 %v2388, 1.442695
        %v2458 = vpow.pop %v2457
        %v2459 = vmul.f32 %v2389, 1.442695
        %v2460 = vpow.pop %v2459
        %v2461 = vmul.f32 %v2390, 1.442695
        %v2462 = vpow.pop %v2461
        %v2463 = vmul.f32 %v2391, 1.442695
        %v2464 = vpow.pop %v2463
        %v2465 = vmul.f32 %v2392, 1.442695
        %v2466 = vpow.pop %v2465
        %v2467 = vmul.f32 %v2393, 1.442695
        %v2468 = vpow.pop %v2467
        %v2469 = vmul.f32 %v2394, 1.442695
        %v2470 = vpow.pop %v2469
        %v2471 = vmul.f32 %v2395, 1.442695
        %v2472 = vpow.pop %v2471
        %v2473 = vmul.f32 %v2396, 1.442695
        %v2474 = vpow.pop %v2473
        %v2475 = vmul.f32 %v2397, 1.442695
        %v2476 = vpow.pop %v2475
        %v2477 = vmul.f32 %v2398, 1.442695
        %v2478 = vpow.pop %v2477
        %v2479 = vmul.f32 %v2399, 1.442695
        %v2480 = vpow.pop %v2479
        %v2481 = vmul.f32 %v2400, 1.442695
        %v2482 = vpow.pop %v2481
        %v2483 = vmul.f32 %v2401, 1.442695
        %v2484 = vpow.pop %v2483
        %v2485 = vmul.f32 %v2402, 1.442695
        %v2486 = vpow.pop %v2485
        %v2487 = vmul.f32 %v2403, 1.442695
        %v2488 = vpow.pop %v2487
        %v2489 = vmul.f32 %v2404, 1.442695
        %v2490 = vpow.pop %v2489
        %v2491 = vmul.f32 %v2405, 1.442695
        %v2492 = vpow.pop %v2491
        %v2493 = vmul.f32 %v2406, 1.442695
        %v2494 = vpow.pop %v2493
        %v2495 = vmul.f32 %v2407, 1.442695
        %v2496 = vpow.pop %v2495
        %v2497 = vmul.f32 %v2408, 1.442695
        %v2498 = vpow.pop %v2497
        %v2499 = vmul.f32 %v2409, 1.442695
        %v2500 = vpow.pop %v2499
        %v2501 = vmul.f32 %v2410, 1.442695
        %v2502 = vpow.pop %v2501
        %v2503 = vmul.f32 %v2411, 1.442695
        %v2504 = vpow.pop %v2503
        %v2505 = vmul.f32 %v2412, 1.442695
        %v2506 = vpow.pop %v2505
        %v2507 = vmul.f32 %v2413, 1.442695
        %v2508 = vpow.pop %v2507
        %v2509 = vmul.f32 %v2414, 1.442695
        %v2510 = vpow.pop %v2509
        %v2511 = vmul.f32 %v2415, 1.442695
        %v2512 = vpow.pop %v2511
        %v2513 = vmul.f32 %v2416, 1.442695
        %v2514 = vpow.pop %v2513
        %v2515 = vmul.f32 %v2417, 1.442695
        %v2516 = vpow.pop %v2515
        %v2517 = vmul.f32 %v2418, 1.442695
        %v2518 = vpow.pop %v2517
        %v2519 = vmul.f32 %v2419, 1.442695
        %v2520 = vpow.pop %v2519
        %v2521 = vmul.f32 %v2420, 1.442695
        %v2522 = vpow.pop %v2521
        %v2523 = vmul.f32 %v2421, 1.442695
        %v2524 = vpow.pop %v2523
        %v2525 = vmul.f32 %v2422, 1.442695
        %v2526 = vpow.pop %v2525
        %v2527 = vmul.f32 %v2423, 1.442695
        %v2528 = vpow.pop %v2527
        %v2529 = vmul.f32 %v2424, 1.442695
        %v2530 = vpow.pop %v2529
        %v2531 = vmul.f32 %v2425, 1.442695
        %v2532 = vpow.pop %v2531
        %v2533 = vmul.f32 %v2426, 1.442695
        %v2534 = vpow.pop %v2533
        %v2535 = vmul.f32 %v2427, 1.442695
        %v2536 = vpow.pop %v2535
        %v2537 = vmul.f32 %v2428, 1.442695
        %v2538 = vpow.pop %v2537
        %v2539 = vmul.f32 %v2429, 1.442695
        %v2540 = vpow.pop %v2539
        %v2541 = vmul.f32 %v2430, 1.442695
        %v2542 = vpow.pop %v2541
        %v2543 = vmul.f32 %v2431, 1.442695
        %v2544 = vpow.pop %v2543
        %v2545 = vmul.f32 %v2432, 1.442695
        %v2546 = vpow.pop %v2545
        %v2547 = vmul.f32 %v2433, 1.442695
        %v2548 = vpow.pop %v2547
        %v2549 = vmul.f32 %v2434, 1.442695
        %v2550 = vpow.pop %v2549
        %v2551 = vmul.f32 %v2435, 1.442695
        %v2552 = vpow.pop %v2551
        %v2553 = vmul.f32 %v2436, 1.442695
        %v2554 = vpow.pop %v2553
        %v2555 = vmul.f32 %v2437, 1.442695
        %v2556 = vpow.pop %v2555
        %v2557 = vmul.f32 %v2438, 1.442695
        %v2558 = vpow.pop %v2557
        %v2559 = vmul.f32 %v2439, 1.442695
        %v2560 = vpow.pop %v2559
        %v2561 = vmul.f32 %v2440, 1.442695
        %v2562 = vpow.pop %v2561
        %v2563 = vmul.f32 %v2441, 1.442695
        %v2564 = vpow.pop %v2563
        %v2565 = vmul.f32 %v2442, 1.442695
        %v2566 = vpow.pop %v2565
        %v2567 = vmul.f32 %v2443, 1.442695
        %v2568 = vpow.pop %v2567
        %v2569 = vmul.f32 %v2444, 1.442695
        %v2570 = vpow.pop %v2569
        %v2571 = vmul.f32 %v2445, 1.442695
        %v2572 = vpow.pop %v2571
        %v2573 = vmul.f32 %v2446, 1.442695
        %v2574 = vpow.pop %v2573
        %s2575 = sadd.s32 0, 6
        %s2576 = scalar_lea.vmem %s263, %s2575
        %v2577 = vld [vmem:[%s2576] sm:$0x3]
        %v2579 = vlaneseq
        %v2580 = vshrl.u32 %v2579, 7
        %v2581 = vsub.s32 0, %v2580
        %v2582 = vrot.slane %v2577, %v2581
        %v2583 = vlaneseq
        %v2584 = vshrl.u32 %v2583, 7
        %v2585 = vsub.s32 1, %v2584
        %v2586 = vrot.slane %v2577, %v2585
        %v2589 = vsel %vm280, %v2582, 1.0
        %v2590 = vsel %vm280, %v2586, 1.0
        %2591 = vmatprep.subr.mxu0 %v2510
        %2592 = vmatpush1.msra.mxu0 %v2508
        %2593 = vmatprep.subr.mxu0 %v2506
        %2594 = vmatpush1.msra.mxu0 %v2504
        %2595 = vmatprep.subr.mxu0 %v2502
        %2596 = vmatpush1.msra.mxu0 %v2500
        %2597 = vmatprep.subr.mxu0 %v2498
        %2598 = vmatpush1.msra.mxu0 %v2496
        %2599 = vmatprep.subr.mxu0 %v2494
        %2600 = vmatpush1.msra.mxu0 %v2492
        %2601 = vmatprep.subr.mxu0 %v2490
        %2602 = vmatpush1.msra.mxu0 %v2488
        %2603 = vmatprep.subr.mxu0 %v2486
        %2604 = vmatpush1.msra.mxu0 %v2484
        %2605 = vmatprep.subr.mxu0 %v2482
        %2606 = vmatpush1.msra.mxu0 %v2480
        %2607 = vmatprep.subr.mxu0 %v2478
        %2608 = vmatpush1.msra.mxu0 %v2476
        %2609 = vmatprep.subr.mxu0 %v2474
        %2610 = vmatpush1.msra.mxu0 %v2472
        %2611 = vmatprep.subr.mxu0 %v2470
        %2612 = vmatpush1.msra.mxu0 %v2468
        %2613 = vmatprep.subr.mxu0 %v2466
        %2614 = vmatpush1.msra.mxu0 %v2464
        %2615 = vmatprep.subr.mxu0 %v2462
        %2616 = vmatpush1.msra.mxu0 %v2460
        %2617 = vmatprep.subr.mxu0 %v2458
        %2618 = vmatpush1.msra.mxu0 %v2456
        %2619 = vmatprep.subr.mxu0 %v2454
        %2620 = vmatpush1.msra.mxu0 %v2452
        %2621 = vmatprep.subr.mxu0 %v2450
        %2622 = vmatpush1.msra.mxu0 %v2448
        %2623 = vmatprep.subr.mxu0 %v2574
        %2624 = vmatpush2.msra.mxu0 %v2572
        %2625 = vmatprep.subr.mxu0 %v2570
        %2626 = vmatpush2.msra.mxu0 %v2568
        %2627 = vmatprep.subr.mxu0 %v2566
        %2628 = vmatpush2.msra.mxu0 %v2564
        %2629 = vmatprep.subr.mxu0 %v2562
        %2630 = vmatpush2.msra.mxu0 %v2560
        %2631 = vmatprep.subr.mxu0 %v2558
        %2632 = vmatpush2.msra.mxu0 %v2556
        %2633 = vmatprep.subr.mxu0 %v2554
        %2634 = vmatpush2.msra.mxu0 %v2552
        %2635 = vmatprep.subr.mxu0 %v2550
        %2636 = vmatpush2.msra.mxu0 %v2548
        %2637 = vmatprep.subr.mxu0 %v2546
        %2638 = vmatpush2.msra.mxu0 %v2544
        %2639 = vmatprep.subr.mxu0 %v2542
        %2640 = vmatpush2.msra.mxu0 %v2540
        %2641 = vmatprep.subr.mxu0 %v2538
        %2642 = vmatpush2.msra.mxu0 %v2536
        %2643 = vmatprep.subr.mxu0 %v2534
        %2644 = vmatpush2.msra.mxu0 %v2532
        %2645 = vmatprep.subr.mxu0 %v2530
        %2646 = vmatpush2.msra.mxu0 %v2528
        %2647 = vmatprep.subr.mxu0 %v2526
        %2648 = vmatpush2.msra.mxu0 %v2524
        %2649 = vmatprep.subr.mxu0 %v2522
        %2650 = vmatpush2.msra.mxu0 %v2520
        %2651 = vmatprep.subr.mxu0 %v2518
        %2652 = vmatpush2.msra.mxu0 %v2516
        %2653 = vmatprep.subr.mxu0 %v2514
        %2654 = vmatpush2.msra.mxu0 %v2512
        %2655 = vmatprep.mubr.f32.mxu0 %v2590
        %2656 = vmatmul.mubr.f32.gmra.mxu0 %v2589
        %v2657 = vpop.f32.mrf.mxu0
        %v2658 = vadd.f32 0.0, %v2657
        %v2659 = vpop.f32.mrf.mxu0
        %v2660 = vadd.f32 0.0, %v2659
        %2661 = vdwg.mxu0
        %v2662 = vrcp.pop %v2658
        %v2663 = vrcp.pop %v2660
        %v2664 = vmul.f32 %v2658, %v2662
        %v2665 = vmul.f32 %v2660, %v2663
        %v2666 = vsub.f32 2.0, %v2664
        %v2667 = vsub.f32 2.0, %v2665
        %v2668 = vmul.f32 %v2662, %v2666
        %v2669 = vmul.f32 %v2663, %v2667
        %v2670 = vmul.f32 %v854, %v2658
        %v2671 = vmul.f32 %v854, %v2660
        %v2674 = vrot.slane %v2668, 1
        %v2675 = vrot.slane %v2669, 1
        %v2678 = vmul.f32 %v2670, %v2674
        %v2679 = vmul.f32 %v2671, %v2675
        %v2680 = vadd.f32 %v2678, %v2301
        %v2681 = vadd.f32 %v2679, %v2305
        %v2684 = vcombine.low %v2680, %v2681
        %v2686 = vunpack.c.l.s4 1966171168
        %v2687 = vunpack.c.0.s8 %v2686
        %v2688 = vlaneseq
        %v2689 = vshrl.u32 %v2688, 7
        %v2690 = vsub.s32 %v2687, %v2689
        %v2691 = vrot.slane %v2684, %v2690
        %v2693 = vunpack.c.l.s4 1966171168
        %v2694 = vunpack.c.0.s8 %v2693
        %v2695 = vlaneseq
        %v2696 = vshrl.u32 %v2695, 7
        %v2697 = vsub.s32 %v2694, %v2696
        %v2698 = vrot.slane %v2691, %v2697
        %s2700 = scalar_lea.vmem %s254, 6 [#allocation6]
        %2701 = vst.msk [vmem:[%s2700] sm:$0x3] %vm888, %v2698
        %s2702 = sand.u32 %s147, 1
        %s2703 = scalar_lea.sflag [#allocation4], %s2702
        %s2704 = sand.u32 %s147, 1
        %s2705 = smul.addr %s2704, 8
        %s2706 = scalar_lea.vmem [#allocation6], %s2705
        // Predicated region
        $region41: #{tpu_custom_call.1} parent=35 // pred_check
          %p2707 = pneg %p157
        $region42: #{tpu_custom_call.1} parent=35 // pred_check_branch
          %2709 = sbr.rel (%p2707) target = $region44
        $region43: #{tpu_custom_call.1} parent=35 // pred_region
          %s2710 = smul.u32 4, %s26
          %s2711 = smul.u32 2, %s27
          %s2713 = ssub.s32 128, 128
          %2714 = vsyncadd %s2703, %s2713
          %s2715 = smul.addr %s2710, 2
          %s2716 = sadd.s32 %s2711, %s2715
          %s2717 = smul.addr %s25, 8
          %s2718 = sadd.s32 %s2716, %s2717
          %s2719 = smul.addr %s2718, 16
          %s2720 = scalar_lea.hbm %s4, %s2719
          %s2721 = sshll.u32 %s2706, 4
          %s2722 = int_to_ptr.vmem [resolvable:$true] %s2721
          %2727 = dma.vmem_to_hbm [thread:$0]  %s2722, 128, %s2720, %s2703, 32, 32, 2
        $region44: #{tpu_custom_call.1} parent=35 // pred_fallthru
          _
      $region36: #{tpu_custom_call.1} parent=5 // pred_fallthru
        _
      %p2728 = scmp.le.s32.totalorder 2, %s15
      // Predicated region
      $region45: #{tpu_custom_call.1} parent=5 // pred_check
        %p2729 = pneg %p2728
      $region46: #{tpu_custom_call.1} parent=5 // pred_check_branch
        %2731 = sbr.rel (%p2729) target = $region48
      $region47: #{tpu_custom_call.1} parent=5 // pred_region
        %s2732 = ssub.s32 %s15, 2
        // Predicated region
        $region49: #{tpu_custom_call.1} parent=47 // pred_check
          %p2733 = pneg %p163
        $region50: #{tpu_custom_call.1} parent=47 // pred_check_branch
          %2735 = sbr.rel (%p2733) target = $region52
        $region51: #{tpu_custom_call.1} parent=47 // pred_region
          %s2736 = sand.u32 %s148, 1
          %s2737 = scalar_lea.sflag [#allocation4], %s2736
          %s2738 = sand.u32 %s148, 1
          %s2739 = smul.addr %s2738, 8
          %s2740 = scalar_lea.vmem [#allocation6], %s2739
          %2741 = dma.done %s2737, 128
        $region52: #{tpu_custom_call.1} parent=47 // pred_fallthru
          _
      $region48: #{tpu_custom_call.1} parent=5 // pred_fallthru
        _
    $region6: #{tpu_custom_call.1} parent=1 // loop_footer
      %s19 = sadd.s32 1, %s15
    $region7: #{tpu_custom_call.1} parent=1 // loop_footer_branch
      %14 = sbr.rel target = $region3
    $region8: #{tpu_custom_call.1} parent=1 // loop_exit
      _
    %2742 = vsyncpa [#allocation4], 1
    %s2743 = scalar_lea.sflag [#allocation4], 1
    %2744 = vsyncpa %s2743, 1
    %2745 = vsyncpa [#allocation5], 1
    %s2746 = scalar_lea.sflag [#allocation5], 1
    %2747 = vsyncpa %s2746, 1

</llo_original>
